<compile_context>
chip_gen: v7x
topology: tpu7x:2x2x1
jax: 0.10.0
libtpu: 0.0.40
codegen_flags: <defaults>
</compile_context>

<pallas_src>
import functools

import jax
import jax.numpy as jnp
from jax.experimental import pallas as pl
from jax.experimental.pallas import tpu as pltpu


# ----------------------------------------------------------------------------
# Fused DilConv kernel: one batch image per grid step.
#   1) zero-pad the image into a VMEM scratch (in-kernel, no HBM pad copy)
#   2) depthwise dilated conv = static shift-and-accumulate over the K*K taps
#      (cross-correlation, same as PyTorch; weights are not flipped)
#   3) fused 1x1 conv = per-pixel matmul over channels on the MXU
# ----------------------------------------------------------------------------
def _dilconv_kernel(x_ref, wdw_ref, wpw_ref, o_ref, xpad_ref, *,
                    K, dil, pad, stride, H, W, Ho, Wo):
    # In-kernel zero padding into VMEM scratch.
    xpad_ref[...] = jnp.zeros_like(xpad_ref)
    xpad_ref[pad:pad + H, pad:pad + W, :] = x_ref[...]

    C = x_ref.shape[-1]
    acc = jnp.zeros((Ho, Wo, C), jnp.float32)
    for kh in range(K):                       # small static tap loops
        for kw in range(K):
            if stride == 1:
                tap = xpad_ref[kh * dil:kh * dil + Ho,
                               kw * dil:kw * dil + Wo, :]
            else:
                # strided taps for stride > 1 (not exercised by the demo)
                tap = xpad_ref[pl.ds(kh * dil, Ho, stride),
                               pl.ds(kw * dil, Wo, stride), :]
            acc = acc + tap * wdw_ref[kh, kw, :]

    # Fused pointwise 1x1 conv: intermediate stays in VMEM, only the final
    # (Ho*Wo, Co) result is written back to HBM.
    o_ref[...] = jnp.dot(acc.reshape(Ho * Wo, C), wpw_ref[...],
                         preferred_element_type=jnp.float32)


def dil_conv(x_nchw, w_dw, w_pw, *, stride, pad, dil):
    """DilConv forward.

    x_nchw : (N, C_in, H, W) float32   (PyTorch layout)
    w_dw   : (K, K, C_in)              depthwise weights (groups=C_in, no bias)
    w_pw   : (C_in, C_out)             1x1 conv weights (no bias)
    returns: (N, C_out, Ho, Wo) float32
    """
    x = jnp.transpose(x_nchw, (0, 2, 3, 1)).astype(jnp.float32)   # -> NHWC
    N, H, W, C = x.shape
    K = w_dw.shape[0]
    Co = w_pw.shape[1]
    Ho = (H + 2 * pad - dil * (K - 1) - 1) // stride + 1
    Wo = (W + 2 * pad - dil * (K - 1) - 1) // stride + 1
    Hp, Wp = H + 2 * pad, W + 2 * pad

    kernel = functools.partial(_dilconv_kernel, K=K, dil=dil, pad=pad,
                               stride=stride, H=H, W=W, Ho=Ho, Wo=Wo)
    out = pl.pallas_call(
        kernel,
        out_shape=jax.ShapeDtypeStruct((N, Ho * Wo, Co), jnp.float32),
        grid=(N,),
        in_specs=[
            pl.BlockSpec((None, H, W, C), lambda n: (n, 0, 0, 0)),
            pl.BlockSpec((K, K, C), lambda n: (0, 0, 0)),
            pl.BlockSpec((C, Co), lambda n: (0, 0)),
        ],
        out_specs=pl.BlockSpec((None, Ho * Wo, Co), lambda n: (n, 0, 0)),
        scratch_shapes=[pltpu.VMEM((Hp, Wp, C), jnp.float32)],
        compiler_params=pltpu.CompilerParams(
            dimension_semantics=("parallel",)),
    )(x, w_dw, w_pw)

    return jnp.transpose(out.reshape(N, Ho, Wo, Co), (0, 3, 1, 2))   # NCHW


# ----------------------------------------------------------------------------
# Pure-XLA reference (lax conv) to validate the Pallas path.
# ----------------------------------------------------------------------------
def _reference(x_nchw, w_dw, w_pw, *, stride, pad, dil):
    x = jnp.transpose(x_nchw, (0, 2, 3, 1)).astype(jnp.float32)
    C = x.shape[-1]
    dn = ("NHWC", "HWIO", "NHWC")
    a = jax.lax.conv_general_dilated(
        x, w_dw[:, :, None, :], (stride, stride), [(pad, pad), (pad, pad)],
        rhs_dilation=(dil, dil), dimension_numbers=dn,
        feature_group_count=C)
    o = jnp.einsum("nhwc,cd->nhwd", a, w_pw)
    return jnp.transpose(o, (0, 3, 1, 2))


if __name__ == "__main__":
    N, C_in, C_out, H, W = 2, 8, 8, 16, 16
    key = jax.random.PRNGKey(0)
    kx, k1, k2, k3, k4 = jax.random.split(key, 5)
    x = jax.random.normal(kx, (N, C_in, H, W), jnp.float32)   # NCHW, like PyTorch

    # DilConv(C_in, C_out, kernel_size=3, stride=1, padding=2, dilation=2)
    w_dw3 = 0.1 * jax.random.normal(k1, (3, 3, C_in), jnp.float32)
    w_pw3 = 0.1 * jax.random.normal(k2, (C_in, C_out), jnp.float32)
    out3 = dil_conv(x, w_dw3, w_pw3, stride=1, pad=2, dil=2)

    # DilConv(C_in, C_out, kernel_size=5, stride=1, padding=4, dilation=2)
    w_dw5 = 0.1 * jax.random.normal(k3, (5, 5, C_in), jnp.float32)
    w_pw5 = 0.1 * jax.random.normal(k4, (C_in, C_out), jnp.float32)
    out5 = dil_conv(x, w_dw5, w_pw5, stride=1, pad=4, dil=2)

    jax.block_until_ready((out3, out5))

    assert out3.shape == (N, C_out, H, W)
    assert out5.shape == (N, C_out, H, W)

    r3 = _reference(x, w_dw3, w_pw3, stride=1, pad=2, dil=2)
    r5 = _reference(x, w_dw5, w_pw5, stride=1, pad=4, dil=2)
    assert jnp.allclose(out3, r3, atol=1e-4, rtol=1e-4)
    assert jnp.allclose(out5, r5, atol=1e-4, rtol=1e-4)

    print("KERNEL_OK")
</pallas_src>

<mosaic_0001>
module attributes {stable_mosaic.version = 11 : i64} {
  func.func @_dilconv_kernel(%arg0: i32, %arg1: memref<1x16x16x8xf32, #tpu.memory_space<vmem>>, %arg2: memref<3x3x8xf32, #tpu.memory_space<vmem>>, %arg3: memref<8x8xf32, #tpu.memory_space<vmem>>, %arg4: memref<1x256x8xf32, #tpu.memory_space<vmem>>, %arg5: memref<20x20x8xf32, #tpu.memory_space<vmem>>) attributes {dimension_semantics = [#tpu.dimension_semantics<parallel>], iteration_bounds = array<i64: 2>, scalar_prefetch = 0 : i64, scratch_operands = 1 : i64, tpu.core_type = #tpu.core_type<tc>, window_params = [{transform_indices = @transform_0, window_bounds = array<i64: 1, 16, 16, 8>}, {pipeline_mode = #tpu.pipeline_mode<synchronous>, transform_indices = @transform_1, window_bounds = array<i64: 3, 3, 8>}, {pipeline_mode = #tpu.pipeline_mode<synchronous>, transform_indices = @transform_2, window_bounds = array<i64: 8, 8>}, {transform_indices = @transform_3, window_bounds = array<i64: 1, 256, 8>}]} {
    %cst = arith.constant 0.000000e+00 : f32
    %0 = vector.broadcast %cst : f32 to vector<20x20x8xf32>
    %c0 = arith.constant 0 : index
    %c0_0 = arith.constant 0 : index
    %c0_1 = arith.constant 0 : index
    %1 = vector.load %arg5[%c0, %c0_0, %c0_1] : memref<20x20x8xf32, #tpu.memory_space<vmem>>, vector<20x20x8xf32>
    tpu.vector_store %arg5[%c0, %c0_0, %c0_1], %0 {strides = array<i32>} : memref<20x20x8xf32, #tpu.memory_space<vmem>>, vector<20x20x8xf32>,
    %c0_2 = arith.constant 0 : index
    %c0_3 = arith.constant 0 : index
    %c0_4 = arith.constant 0 : index
    %c0_5 = arith.constant 0 : index
    %2 = vector.load %arg1[%c0_2, %c0_3, %c0_4, %c0_5] : memref<1x16x16x8xf32, #tpu.memory_space<vmem>>, vector<1x16x16x8xf32>
    %3 = vector.shape_cast %2 : vector<1x16x16x8xf32> to vector<16x16x8xf32>
    %c2 = arith.constant 2 : index
    %c2_6 = arith.constant 2 : index
    %c0_7 = arith.constant 0 : index
    %4 = vector.load %arg5[%c2, %c2_6, %c0_7] : memref<20x20x8xf32, #tpu.memory_space<vmem>>, vector<16x16x8xf32>
    tpu.vector_store %arg5[%c2, %c2_6, %c0_7], %3 {strides = array<i32>} : memref<20x20x8xf32, #tpu.memory_space<vmem>>, vector<16x16x8xf32>,
    %cst_8 = arith.constant 0.000000e+00 : f32
    %5 = vector.broadcast %cst_8 : f32 to vector<16x16x8xf32>
    %c0_9 = arith.constant 0 : index
    %c0_10 = arith.constant 0 : index
    %c0_11 = arith.constant 0 : index
    %6 = vector.load %arg5[%c0_9, %c0_10, %c0_11] : memref<20x20x8xf32, #tpu.memory_space<vmem>>, vector<16x16x8xf32>
    %c0_12 = arith.constant 0 : index
    %c0_13 = arith.constant 0 : index
    %c0_14 = arith.constant 0 : index
    %7 = vector.load %arg2[%c0_12, %c0_13, %c0_14] : memref<3x3x8xf32, #tpu.memory_space<vmem>>, vector<1x1x8xf32>
    %8 = vector.shape_cast %7 : vector<1x1x8xf32> to vector<8xf32>
    %9 = vector.shape_cast %8 : vector<8xf32> to vector<1x1x8xf32>
    %10 = vector.broadcast %9 : vector<1x1x8xf32> to vector<16x16x8xf32>
    %11 = arith.mulf %6, %10 : vector<16x16x8xf32>
    %12 = arith.addf %5, %11 : vector<16x16x8xf32>
    %c0_15 = arith.constant 0 : index
    %c2_16 = arith.constant 2 : index
    %c0_17 = arith.constant 0 : index
    %13 = vector.load %arg5[%c0_15, %c2_16, %c0_17] : memref<20x20x8xf32, #tpu.memory_space<vmem>>, vector<16x16x8xf32>
    %c0_18 = arith.constant 0 : index
    %c1 = arith.constant 1 : index
    %c0_19 = arith.constant 0 : index
    %14 = vector.load %arg2[%c0_18, %c1, %c0_19] : memref<3x3x8xf32, #tpu.memory_space<vmem>>, vector<1x1x8xf32>
    %15 = vector.shape_cast %14 : vector<1x1x8xf32> to vector<8xf32>
    %16 = vector.shape_cast %15 : vector<8xf32> to vector<1x1x8xf32>
    %17 = vector.broadcast %16 : vector<1x1x8xf32> to vector<16x16x8xf32>
    %18 = arith.mulf %13, %17 : vector<16x16x8xf32>
    %19 = arith.addf %12, %18 : vector<16x16x8xf32>
    %c0_20 = arith.constant 0 : index
    %c4 = arith.constant 4 : index
    %c0_21 = arith.constant 0 : index
    %20 = vector.load %arg5[%c0_20, %c4, %c0_21] : memref<20x20x8xf32, #tpu.memory_space<vmem>>, vector<16x16x8xf32>
    %c0_22 = arith.constant 0 : index
    %c2_23 = arith.constant 2 : index
    %c0_24 = arith.constant 0 : index
    %21 = vector.load %arg2[%c0_22, %c2_23, %c0_24] : memref<3x3x8xf32, #tpu.memory_space<vmem>>, vector<1x1x8xf32>
    %22 = vector.shape_cast %21 : vector<1x1x8xf32> to vector<8xf32>
    %23 = vector.shape_cast %22 : vector<8xf32> to vector<1x1x8xf32>
    %24 = vector.broadcast %23 : vector<1x1x8xf32> to vector<16x16x8xf32>
    %25 = arith.mulf %20, %24 : vector<16x16x8xf32>
    %26 = arith.addf %19, %25 : vector<16x16x8xf32>
    %c2_25 = arith.constant 2 : index
    %c0_26 = arith.constant 0 : index
    %c0_27 = arith.constant 0 : index
    %27 = vector.load %arg5[%c2_25, %c0_26, %c0_27] : memref<20x20x8xf32, #tpu.memory_space<vmem>>, vector<16x16x8xf32>
    %c1_28 = arith.constant 1 : index
    %c0_29 = arith.constant 0 : index
    %c0_30 = arith.constant 0 : index
    %28 = vector.load %arg2[%c1_28, %c0_29, %c0_30] : memref<3x3x8xf32, #tpu.memory_space<vmem>>, vector<1x1x8xf32>
    %29 = vector.shape_cast %28 : vector<1x1x8xf32> to vector<8xf32>
    %30 = vector.shape_cast %29 : vector<8xf32> to vector<1x1x8xf32>
    %31 = vector.broadcast %30 : vector<1x1x8xf32> to vector<16x16x8xf32>
    %32 = arith.mulf %27, %31 : vector<16x16x8xf32>
    %33 = arith.addf %26, %32 : vector<16x16x8xf32>
    %c2_31 = arith.constant 2 : index
    %c2_32 = arith.constant 2 : index
    %c0_33 = arith.constant 0 : index
    %34 = vector.load %arg5[%c2_31, %c2_32, %c0_33] : memref<20x20x8xf32, #tpu.memory_space<vmem>>, vector<16x16x8xf32>
    %c1_34 = arith.constant 1 : index
    %c1_35 = arith.constant 1 : index
    %c0_36 = arith.constant 0 : index
    %35 = vector.load %arg2[%c1_34, %c1_35, %c0_36] : memref<3x3x8xf32, #tpu.memory_space<vmem>>, vector<1x1x8xf32>
    %36 = vector.shape_cast %35 : vector<1x1x8xf32> to vector<8xf32>
    %37 = vector.shape_cast %36 : vector<8xf32> to vector<1x1x8xf32>
    %38 = vector.broadcast %37 : vector<1x1x8xf32> to vector<16x16x8xf32>
    %39 = arith.mulf %34, %38 : vector<16x16x8xf32>
    %40 = arith.addf %33, %39 : vector<16x16x8xf32>
    %c2_37 = arith.constant 2 : index
    %c4_38 = arith.constant 4 : index
    %c0_39 = arith.constant 0 : index
    %41 = vector.load %arg5[%c2_37, %c4_38, %c0_39] : memref<20x20x8xf32, #tpu.memory_space<vmem>>, vector<16x16x8xf32>
    %c1_40 = arith.constant 1 : index
    %c2_41 = arith.constant 2 : index
    %c0_42 = arith.constant 0 : index
    %42 = vector.load %arg2[%c1_40, %c2_41, %c0_42] : memref<3x3x8xf32, #tpu.memory_space<vmem>>, vector<1x1x8xf32>
    %43 = vector.shape_cast %42 : vector<1x1x8xf32> to vector<8xf32>
    %44 = vector.shape_cast %43 : vector<8xf32> to vector<1x1x8xf32>
    %45 = vector.broadcast %44 : vector<1x1x8xf32> to vector<16x16x8xf32>
    %46 = arith.mulf %41, %45 : vector<16x16x8xf32>
    %47 = arith.addf %40, %46 : vector<16x16x8xf32>
    %c4_43 = arith.constant 4 : index
    %c0_44 = arith.constant 0 : index
    %c0_45 = arith.constant 0 : index
    %48 = vector.load %arg5[%c4_43, %c0_44, %c0_45] : memref<20x20x8xf32, #tpu.memory_space<vmem>>, vector<16x16x8xf32>
    %c2_46 = arith.constant 2 : index
    %c0_47 = arith.constant 0 : index
    %c0_48 = arith.constant 0 : index
    %49 = vector.load %arg2[%c2_46, %c0_47, %c0_48] : memref<3x3x8xf32, #tpu.memory_space<vmem>>, vector<1x1x8xf32>
    %50 = vector.shape_cast %49 : vector<1x1x8xf32> to vector<8xf32>
    %51 = vector.shape_cast %50 : vector<8xf32> to vector<1x1x8xf32>
    %52 = vector.broadcast %51 : vector<1x1x8xf32> to vector<16x16x8xf32>
    %53 = arith.mulf %48, %52 : vector<16x16x8xf32>
    %54 = arith.addf %47, %53 : vector<16x16x8xf32>
    %c4_49 = arith.constant 4 : index
    %c2_50 = arith.constant 2 : index
    %c0_51 = arith.constant 0 : index
    %55 = vector.load %arg5[%c4_49, %c2_50, %c0_51] : memref<20x20x8xf32, #tpu.memory_space<vmem>>, vector<16x16x8xf32>
    %c2_52 = arith.constant 2 : index
    %c1_53 = arith.constant 1 : index
    %c0_54 = arith.constant 0 : index
    %56 = vector.load %arg2[%c2_52, %c1_53, %c0_54] : memref<3x3x8xf32, #tpu.memory_space<vmem>>, vector<1x1x8xf32>
    %57 = vector.shape_cast %56 : vector<1x1x8xf32> to vector<8xf32>
    %58 = vector.shape_cast %57 : vector<8xf32> to vector<1x1x8xf32>
    %59 = vector.broadcast %58 : vector<1x1x8xf32> to vector<16x16x8xf32>
    %60 = arith.mulf %55, %59 : vector<16x16x8xf32>
    %61 = arith.addf %54, %60 : vector<16x16x8xf32>
    %c4_55 = arith.constant 4 : index
    %c4_56 = arith.constant 4 : index
    %c0_57 = arith.constant 0 : index
    %62 = vector.load %arg5[%c4_55, %c4_56, %c0_57] : memref<20x20x8xf32, #tpu.memory_space<vmem>>, vector<16x16x8xf32>
    %c2_58 = arith.constant 2 : index
    %c2_59 = arith.constant 2 : index
    %c0_60 = arith.constant 0 : index
    %63 = vector.load %arg2[%c2_58, %c2_59, %c0_60] : memref<3x3x8xf32, #tpu.memory_space<vmem>>, vector<1x1x8xf32>
    %64 = vector.shape_cast %63 : vector<1x1x8xf32> to vector<8xf32>
    %65 = vector.shape_cast %64 : vector<8xf32> to vector<1x1x8xf32>
    %66 = vector.broadcast %65 : vector<1x1x8xf32> to vector<16x16x8xf32>
    %67 = arith.mulf %62, %66 : vector<16x16x8xf32>
    %68 = arith.addf %61, %67 : vector<16x16x8xf32>
    %69 = vector.shape_cast %68 : vector<16x16x8xf32> to vector<256x8xf32>
    %c0_61 = arith.constant 0 : index
    %c0_62 = arith.constant 0 : index
    %70 = vector.load %arg3[%c0_61, %c0_62] : memref<8x8xf32, #tpu.memory_space<vmem>>, vector<8x8xf32>
    %cst_63 = arith.constant dense<0.000000e+00> : vector<256x8xf32>
    %71 = tpu.matmul %69, %70, %cst_63 {dimension_numbers = #tpu.dot_dimension_numbers<[1], [0], [0], [1], [0, 0, 1, 1], [], []>} : vector<256x8xf32>, vector<8x8xf32>, vector<256x8xf32> -> vector<256x8xf32>
    %c0_64 = arith.constant 0 : index
    %c0_65 = arith.constant 0 : index
    %c0_66 = arith.constant 0 : index
    %72 = vector.load %arg4[%c0_64, %c0_65, %c0_66] : memref<1x256x8xf32, #tpu.memory_space<vmem>>, vector<1x256x8xf32>
    %73 = vector.shape_cast %72 : vector<1x256x8xf32> to vector<256x8xf32>
    %74 = vector.shape_cast %71 : vector<256x8xf32> to vector<1x256x8xf32>
    tpu.vector_store %arg4[%c0_64, %c0_65, %c0_66], %74 {strides = array<i32>} : memref<1x256x8xf32, #tpu.memory_space<vmem>>, vector<1x256x8xf32>,
    return
  }
  func.func @transform_0(%arg0: i32) -> (i32, i32, i32, i32) {
    %c0_i32 = arith.constant 0 : i32
    %c0_i32_0 = arith.constant 0 : i32
    %c0_i32_1 = arith.constant 0 : i32
    %c0_i32_2 = arith.constant 0 : i32
    return %arg0, %c0_i32, %c0_i32_0, %c0_i32_1 : i32, i32, i32, i32
  }
  func.func @transform_1(%arg0: i32) -> (i32, i32, i32) {
    %c0_i32 = arith.constant 0 : i32
    %c0_i32_0 = arith.constant 0 : i32
    %c0_i32_1 = arith.constant 0 : i32
    %c0_i32_2 = arith.constant 0 : i32
    return %c0_i32, %c0_i32_0, %c0_i32_1 : i32, i32, i32
  }
  func.func @transform_2(%arg0: i32) -> (i32, i32) {
    %c0_i32 = arith.constant 0 : i32
    %c0_i32_0 = arith.constant 0 : i32
    %c0_i32_1 = arith.constant 0 : i32
    return %c0_i32, %c0_i32_0 : i32, i32
  }
  func.func @transform_3(%arg0: i32) -> (i32, i32, i32) {
    %c0_i32 = arith.constant 0 : i32
    %c0_i32_0 = arith.constant 0 : i32
    %c0_i32_1 = arith.constant 0 : i32
    return %arg0, %c0_i32, %c0_i32_0 : i32, i32, i32
  }
}

</mosaic_0001>

<llo_original>
// kernel: tpu_custom_call.1
$region0: #{tpu_custom_call.1}
  #allocation0 [shape = 'u32[]', space=smem, size = 0x4, offset = 0x4, fixed_abs, tag = 'smem constant byte address 0x4 - core index']
  #allocation1 [shape = 'u32[144,128]{1,0:T(1,128)}', space=vmem, size = 0x12000, scoped, tag = 'internal scratch']
  #allocation2 [shape = 'f32[20,20,8]{2,1,0:T(8,128)}', space=vmem, size = 0x3c000, scoped, tag = 'scratch operand']
  %s0 = inlined_call_operand.vmem [shape: f32[2,16,16,8], index: 0, kind: input, shape index: {}]
  %s1 = inlined_call_operand.vmem [shape: f32[3,3,8], index: 1, kind: input, shape index: {}]
  %s2 = inlined_call_operand.vmem [shape: f32[8,8], index: 2, kind: input, shape index: {}]
  %s3 = inlined_call_operand.vmem [shape: f32[2,256,8], index: 3, kind: output, shape index: {}]
  %s4 = sld [smem:[#allocation0]]
  $region45: #{tpu_custom_call.1} parent=0
    _
  %s6 = ssub.s32 1, %s4
  %s7 = scalar_select 0, %s6, %s4
  loop: start=0, step=1, limit=4
  $region2: #{tpu_custom_call.1} parent=0 // loop_pre_header
    _
  $region3: #{tpu_custom_call.1} parent=0 // loop_header
    %s9 = sphi 0, %s13
    %p10 = scmp.ge.s32.totalorder %s9, 4
    %s19 = sphi 0, %s21
    %s22 = sphi 0, %s19
    %s23 = sphi 0, %s22
    %s39 = sphi 0, %s23
    %s43 = sphi 0, %s43
    %s45 = sphi 0, %s43
    %s46 = sphi 0, %s45
    %s60 = sphi 0, %s46
    %s64 = sphi 0, %s64
    %s66 = sphi 0, %s64
    %s67 = sphi 0, %s66
    %s81 = sphi 0, %s67
    %s87 = sphi 0, %s89
    %s90 = sphi 0, %s87
    %s91 = sphi 0, %s90
    %s107 = sphi 0, %s91
  $region4: #{tpu_custom_call.1} parent=0 // loop_header_branch
    %12 = sbr.rel (%p10) target = $region8
  $region5: #{tpu_custom_call.1} parent=0 // loop_body
    %s14 = ssub.s32 %s9, 1
    %s15 = ssub.s32 %s9, 2
    %s16 = sadd.s32 %s9, 1
    %s17 = ssub.s32 %s9, %s16
    %p18 = scmp.eq.s32.totalorder %s17, 0
    %s20 = sadd.s32 %s19, 1
    %s21 = scalar_select %p18, %s19, %s20
    %p24 = pneg %p18
    %p25 = scmp.eq.s32.totalorder %s9, 1
    %p26 = por %p24, %p25
    %p27 = scmp.ne.s32.totalorder %s19, %s22
    %p28 = scmp.eq.s32.totalorder %s9, 0
    %p29 = por %p27, %p28
    %p30 = scmp.ne.s32.totalorder %s19, %s22
    %p31 = scmp.eq.s32.totalorder %s14, 1
    %p32 = por %p30, %p31
    %p33 = scmp.ne.s32.totalorder %s22, %s23
    %p34 = scmp.eq.s32.totalorder %s14, 0
    %p35 = por %p33, %p34
    %p36 = scmp.ne.s32.totalorder %s22, %s23
    %p37 = scmp.eq.s32.totalorder %s15, 1
    %p38 = por %p36, %p37
    %p40 = scmp.ne.s32.totalorder %s23, %s39
    %p41 = scmp.eq.s32.totalorder %s15, 0
    %p42 = por %p40, %p41
    %s44 = sadd.s32 %s43, 1
    %p47 = scmp.eq.s32.totalorder %s9, 1
    %p48 = scmp.ne.s32.totalorder %s43, %s45
    %p49 = scmp.eq.s32.totalorder %s9, 0
    %p50 = por %p48, %p49
    %p51 = scmp.ne.s32.totalorder %s43, %s45
    %p52 = scmp.eq.s32.totalorder %s14, 1
    %p53 = por %p51, %p52
    %p54 = scmp.ne.s32.totalorder %s45, %s46
    %p55 = scmp.eq.s32.totalorder %s14, 0
    %p56 = por %p54, %p55
    %p57 = scmp.ne.s32.totalorder %s45, %s46
    %p58 = scmp.eq.s32.totalorder %s15, 1
    %p59 = por %p57, %p58
    %p61 = scmp.ne.s32.totalorder %s46, %s60
    %p62 = scmp.eq.s32.totalorder %s15, 0
    %p63 = por %p61, %p62
    %s65 = sadd.s32 %s64, 1
    %p68 = scmp.eq.s32.totalorder %s9, 1
    %p69 = scmp.ne.s32.totalorder %s64, %s66
    %p70 = scmp.eq.s32.totalorder %s9, 0
    %p71 = por %p69, %p70
    %p72 = scmp.ne.s32.totalorder %s64, %s66
    %p73 = scmp.eq.s32.totalorder %s14, 1
    %p74 = por %p72, %p73
    %p75 = scmp.ne.s32.totalorder %s66, %s67
    %p76 = scmp.eq.s32.totalorder %s14, 0
    %p77 = por %p75, %p76
    %p78 = scmp.ne.s32.totalorder %s66, %s67
    %p79 = scmp.eq.s32.totalorder %s15, 1
    %p80 = por %p78, %p79
    %p82 = scmp.ne.s32.totalorder %s67, %s81
    %p83 = scmp.eq.s32.totalorder %s15, 0
    %p84 = por %p82, %p83
    %s85 = ssub.s32 %s9, %s16
    %p86 = scmp.eq.s32.totalorder %s85, 0
    %s88 = sadd.s32 %s87, 1
    %s89 = scalar_select %p86, %s87, %s88
    %p92 = pneg %p86
    %p93 = scmp.eq.s32.totalorder %s9, 1
    %p94 = por %p92, %p93
    %p95 = scmp.ne.s32.totalorder %s87, %s90
    %p96 = scmp.eq.s32.totalorder %s9, 0
    %p97 = por %p95, %p96
    %p98 = scmp.ne.s32.totalorder %s87, %s90
    %p99 = scmp.eq.s32.totalorder %s14, 1
    %p100 = por %p98, %p99
    %p101 = scmp.ne.s32.totalorder %s90, %s91
    %p102 = scmp.eq.s32.totalorder %s14, 0
    %p103 = por %p101, %p102
    %p104 = scmp.ne.s32.totalorder %s90, %s91
    %p105 = scmp.eq.s32.totalorder %s15, 1
    %p106 = por %p104, %p105
    %p108 = scmp.ne.s32.totalorder %s91, %s107
    %p109 = scmp.eq.s32.totalorder %s15, 0
    %p110 = por %p108, %p109
    %p111 = scmp.le.s32.totalorder 1, %s9
    %p112 = scmp.lt.s32.totalorder %s9, 3
    %p113 = pnand %p111, %p112
    %p114 = pneg %p113
    // Predicated region
    $region9: #{tpu_custom_call.1} parent=5 // pred_check
      _
    $region10: #{tpu_custom_call.1} parent=5 // pred_check_branch
      %116 = sbr.rel (%p113) target = $region12
    $region11: #{tpu_custom_call.1} parent=5 // pred_region
      %s117 = ssub.s32 %s9, 1
      // Predicated region
      $region13: #{tpu_custom_call.1} parent=11 // pred_check
        %p118 = pneg %p56
      $region14: #{tpu_custom_call.1} parent=11 // pred_check_branch
        %120 = sbr.rel (%p118) target = $region16
      $region15: #{tpu_custom_call.1} parent=11 // pred_region
        _
      $region16: #{tpu_custom_call.1} parent=11 // pred_fallthru
        _
      // Predicated region
      $region17: #{tpu_custom_call.1} parent=11 // pred_check
        %p121 = pneg %p77
      $region18: #{tpu_custom_call.1} parent=11 // pred_check_branch
        %123 = sbr.rel (%p121) target = $region20
      $region19: #{tpu_custom_call.1} parent=11 // pred_region
        _
      $region20: #{tpu_custom_call.1} parent=11 // pred_fallthru
        _
    $region12: #{tpu_custom_call.1} parent=5 // pred_fallthru
      _
    %p124 = scmp.lt.s32.totalorder %s9, 2
    // Predicated region
    $region21: #{tpu_custom_call.1} parent=5 // pred_check
      %p125 = pneg %p124
    $region22: #{tpu_custom_call.1} parent=5 // pred_check_branch
      %127 = sbr.rel (%p125) target = $region24
    $region23: #{tpu_custom_call.1} parent=5 // pred_region
      // Predicated region
      $region25: #{tpu_custom_call.1} parent=23 // pred_check
        %p128 = pneg %p29
      $region26: #{tpu_custom_call.1} parent=23 // pred_check_branch
        %130 = sbr.rel (%p128) target = $region28
      $region27: #{tpu_custom_call.1} parent=23 // pred_region
        %p131 = scmp.lt.s32.totalorder %s9, 1
        %s132 = scalar_select %p131, %s9, 1
        %s133 = smul.addr %s132, 32
        %s134 = smul.addr %s133, 8
        %s135 = scalar_lea.vmem %s0, %s134
      $region28: #{tpu_custom_call.1} parent=23 // pred_fallthru
        _
    $region24: #{tpu_custom_call.1} parent=5 // pred_fallthru
      _
    %p136 = scmp.le.s32.totalorder 1, %s9
    %p137 = scmp.lt.s32.totalorder %s9, 3
    %p138 = pnand %p136, %p137
    %p139 = pneg %p138
    // Predicated region
    $region29: #{tpu_custom_call.1} parent=5 // pred_check
      _
    $region30: #{tpu_custom_call.1} parent=5 // pred_check_branch
      %141 = sbr.rel (%p138) target = $region32
    $region31: #{tpu_custom_call.1} parent=5 // pred_region
      %s142 = ssub.s32 %s9, 1
      %p143 = scmp.lt.s32.totalorder %s14, 1
      %s144 = scalar_select %p143, %s14, 1
      %s145 = smul.addr %s144, 32
      %s146 = smul.addr %s145, 8
      %s147 = scalar_lea.vmem %s0, %s146
      %p148 = pneg %p35
      %p149 = pneg %p32
      %p150 = pneg %p56
      %p151 = pneg %p53
      %p152 = pneg %p77
      %p153 = pneg %p74
      %p154 = pneg %p103
      %p155 = pneg %p100
      %p156 = scmp.lt.s32.totalorder %s14, 1
      %s157 = scalar_select %p156, %s14, 1
      %s158 = smul.addr %s157, 32
      %s159 = smul.addr %s158, 8
      %s160 = scalar_lea.vmem %s3, %s159
      %p161 = scmp.lt.s32.totalorder %s14, 1
      %s162 = scalar_select %p161, %s14, 1
      %s163 = smul.addr %s162, 32
      %s164 = smul.addr %s163, 8
      %s165 = scalar_lea.vmem %s0, %s164
      %p166 = scmp.lt.s32.totalorder %s14, 1
      %s167 = scalar_select %p166, %s14, 1
      %s168 = smul.addr %s167, 32
      %s169 = smul.addr %s168, 8
      %s170 = scalar_lea.vmem %s3, %s169
      %vm171 = vcmask 64512
      %172 = vst.msk [vmem:[#allocation2] sm:$0xff] %vm171, 0.0
      %173 = vst.msk [vmem:[#allocation2 + $0x8] sm:$0xff] %vm171, 0.0
      %vm174 = vcmask 60416
      %175 = vst.msk [vmem:[#allocation2 + $0x10] sm:$0xf] %vm174, 0.0
      %176 = vst.msk [vmem:[#allocation2 + $0x18] sm:$0xff] %vm171, 0.0
      %177 = vst.msk [vmem:[#allocation2 + $0x20] sm:$0xff] %vm171, 0.0
      %178 = vst.msk [vmem:[#allocation2 + $0x28] sm:$0xf] %vm174, 0.0
      %179 = vst.msk [vmem:[#allocation2 + $0x30] sm:$0xff] %vm171, 0.0
      %180 = vst.msk [vmem:[#allocation2 + $0x38] sm:$0xff] %vm171, 0.0
      %181 = vst.msk [vmem:[#allocation2 + $0x40] sm:$0xf] %vm174, 0.0
      %182 = vst.msk [vmem:[#allocation2 + $0x48] sm:$0xff] %vm171, 0.0
      %183 = vst.msk [vmem:[#allocation2 + $0x50] sm:$0xff] %vm171, 0.0
      %184 = vst.msk [vmem:[#allocation2 + $0x58] sm:$0xf] %vm174, 0.0
      %185 = vst.msk [vmem:[#allocation2 + $0x60] sm:$0xff] %vm171, 0.0
      %186 = vst.msk [vmem:[#allocation2 + $0x68] sm:$0xff] %vm171, 0.0
      %187 = vst.msk [vmem:[#allocation2 + $0x70] sm:$0xf] %vm174, 0.0
      %188 = vst.msk [vmem:[#allocation2 + $0x78] sm:$0xff] %vm171, 0.0
      %189 = vst.msk [vmem:[#allocation2 + $0x80] sm:$0xff] %vm171, 0.0
      %190 = vst.msk [vmem:[#allocation2 + $0x88] sm:$0xf] %vm174, 0.0
      %191 = vst.msk [vmem:[#allocation2 + $0x90] sm:$0xff] %vm171, 0.0
      %192 = vst.msk [vmem:[#allocation2 + $0x98] sm:$0xff] %vm171, 0.0
      %193 = vst.msk [vmem:[#allocation2 + $0xa0] sm:$0xf] %vm174, 0.0
      %194 = vst.msk [vmem:[#allocation2 + $0xa8] sm:$0xff] %vm171, 0.0
      %195 = vst.msk [vmem:[#allocation2 + $0xb0] sm:$0xff] %vm171, 0.0
      %196 = vst.msk [vmem:[#allocation2 + $0xb8] sm:$0xf] %vm174, 0.0
      %197 = vst.msk [vmem:[#allocation2 + $0xc0] sm:$0xff] %vm171, 0.0
      %198 = vst.msk [vmem:[#allocation2 + $0xc8] sm:$0xff] %vm171, 0.0
      %199 = vst.msk [vmem:[#allocation2 + $0xd0] sm:$0xf] %vm174, 0.0
      %200 = vst.msk [vmem:[#allocation2 + $0xd8] sm:$0xff] %vm171, 0.0
      %201 = vst.msk [vmem:[#allocation2 + $0xe0] sm:$0xff] %vm171, 0.0
      %202 = vst.msk [vmem:[#allocation2 + $0xe8] sm:$0xf] %vm174, 0.0
      %203 = vst.msk [vmem:[#allocation2 + $0xf0] sm:$0xff] %vm171, 0.0
      %204 = vst.msk [vmem:[#allocation2 + $0xf8] sm:$0xff] %vm171, 0.0
      %205 = vst.msk [vmem:[#allocation2 + $0x100] sm:$0xf] %vm174, 0.0
      %206 = vst.msk [vmem:[#allocation2 + $0x108] sm:$0xff] %vm171, 0.0
      %207 = vst.msk [vmem:[#allocation2 + $0x110] sm:$0xff] %vm171, 0.0
      %208 = vst.msk [vmem:[#allocation2 + $0x118] sm:$0xf] %vm174, 0.0
      %209 = vst.msk [vmem:[#allocation2 + $0x120] sm:$0xff] %vm171, 0.0
      %210 = vst.msk [vmem:[#allocation2 + $0x128] sm:$0xff] %vm171, 0.0
      %211 = vst.msk [vmem:[#allocation2 + $0x130] sm:$0xf] %vm174, 0.0
      %212 = vst.msk [vmem:[#allocation2 + $0x138] sm:$0xff] %vm171, 0.0
      %213 = vst.msk [vmem:[#allocation2 + $0x140] sm:$0xff] %vm171, 0.0
      %214 = vst.msk [vmem:[#allocation2 + $0x148] sm:$0xf] %vm174, 0.0
      %215 = vst.msk [vmem:[#allocation2 + $0x150] sm:$0xff] %vm171, 0.0
      %216 = vst.msk [vmem:[#allocation2 + $0x158] sm:$0xff] %vm171, 0.0
      %217 = vst.msk [vmem:[#allocation2 + $0x160] sm:$0xf] %vm174, 0.0
      %218 = vst.msk [vmem:[#allocation2 + $0x168] sm:$0xff] %vm171, 0.0
      %219 = vst.msk [vmem:[#allocation2 + $0x170] sm:$0xff] %vm171, 0.0
      %220 = vst.msk [vmem:[#allocation2 + $0x178] sm:$0xf] %vm174, 0.0
      %221 = vst.msk [vmem:[#allocation2 + $0x180] sm:$0xff] %vm171, 0.0
      %222 = vst.msk [vmem:[#allocation2 + $0x188] sm:$0xff] %vm171, 0.0
      %223 = vst.msk [vmem:[#allocation2 + $0x190] sm:$0xf] %vm174, 0.0
      %224 = vst.msk [vmem:[#allocation2 + $0x198] sm:$0xff] %vm171, 0.0
      %225 = vst.msk [vmem:[#allocation2 + $0x1a0] sm:$0xff] %vm171, 0.0
      %226 = vst.msk [vmem:[#allocation2 + $0x1a8] sm:$0xf] %vm174, 0.0
      %227 = vst.msk [vmem:[#allocation2 + $0x1b0] sm:$0xff] %vm171, 0.0
      %228 = vst.msk [vmem:[#allocation2 + $0x1b8] sm:$0xff] %vm171, 0.0
      %229 = vst.msk [vmem:[#allocation2 + $0x1c0] sm:$0xf] %vm174, 0.0
      %230 = vst.msk [vmem:[#allocation2 + $0x1c8] sm:$0xff] %vm171, 0.0
      %231 = vst.msk [vmem:[#allocation2 + $0x1d0] sm:$0xff] %vm171, 0.0
      %232 = vst.msk [vmem:[#allocation2 + $0x1d8] sm:$0xf] %vm174, 0.0
      %v233 = vld [vmem:[%s165] sm:$0xff]
      %v234 = vld [vmem:[%s165 + $0x8] sm:$0xff]
      %v235 = vld [vmem:[%s165 + $0x10] sm:$0xff]
      %v236 = vld [vmem:[%s165 + $0x18] sm:$0xff]
      %v237 = vld [vmem:[%s165 + $0x20] sm:$0xff]
      %v238 = vld [vmem:[%s165 + $0x28] sm:$0xff]
      %v239 = vld [vmem:[%s165 + $0x30] sm:$0xff]
      %v240 = vld [vmem:[%s165 + $0x38] sm:$0xff]
      %v241 = vld [vmem:[%s165 + $0x40] sm:$0xff]
      %v242 = vld [vmem:[%s165 + $0x48] sm:$0xff]
      %v243 = vld [vmem:[%s165 + $0x50] sm:$0xff]
      %v244 = vld [vmem:[%s165 + $0x58] sm:$0xff]
      %v245 = vld [vmem:[%s165 + $0x60] sm:$0xff]
      %v246 = vld [vmem:[%s165 + $0x68] sm:$0xff]
      %v247 = vld [vmem:[%s165 + $0x70] sm:$0xff]
      %v248 = vld [vmem:[%s165 + $0x78] sm:$0xff]
      %v249 = vld [vmem:[%s165 + $0x80] sm:$0xff]
      %v250 = vld [vmem:[%s165 + $0x88] sm:$0xff]
      %v251 = vld [vmem:[%s165 + $0x90] sm:$0xff]
      %v252 = vld [vmem:[%s165 + $0x98] sm:$0xff]
      %v253 = vld [vmem:[%s165 + $0xa0] sm:$0xff]
      %v254 = vld [vmem:[%s165 + $0xa8] sm:$0xff]
      %v255 = vld [vmem:[%s165 + $0xb0] sm:$0xff]
      %v256 = vld [vmem:[%s165 + $0xb8] sm:$0xff]
      %v257 = vld [vmem:[%s165 + $0xc0] sm:$0xff]
      %v258 = vld [vmem:[%s165 + $0xc8] sm:$0xff]
      %v259 = vld [vmem:[%s165 + $0xd0] sm:$0xff]
      %v260 = vld [vmem:[%s165 + $0xd8] sm:$0xff]
      %v261 = vld [vmem:[%s165 + $0xe0] sm:$0xff]
      %v262 = vld [vmem:[%s165 + $0xe8] sm:$0xff]
      %v263 = vld [vmem:[%s165 + $0xf0] sm:$0xff]
      %v264 = vld [vmem:[%s165 + $0xf8] sm:$0xff]
      %s265 = scalar_lea.vmem [#allocation2], 48
      %266 = vst.msk [vmem:[%s265 + $0x2] sm:$0xff] %vm171, %v233
      %267 = vst.msk [vmem:[%s265 + $0xa] sm:$0xff] %vm171, %v234
      %268 = vst.msk [vmem:[%s265 + $0x1a] sm:$0xff] %vm171, %v235
      %269 = vst.msk [vmem:[%s265 + $0x22] sm:$0xff] %vm171, %v236
      %270 = vst.msk [vmem:[%s265 + $0x32] sm:$0xff] %vm171, %v237
      %271 = vst.msk [vmem:[%s265 + $0x3a] sm:$0xff] %vm171, %v238
      %272 = vst.msk [vmem:[%s265 + $0x4a] sm:$0xff] %vm171, %v239
      %273 = vst.msk [vmem:[%s265 + $0x52] sm:$0xff] %vm171, %v240
      %274 = vst.msk [vmem:[%s265 + $0x62] sm:$0xff] %vm171, %v241
      %275 = vst.msk [vmem:[%s265 + $0x6a] sm:$0xff] %vm171, %v242
      %276 = vst.msk [vmem:[%s265 + $0x7a] sm:$0xff] %vm171, %v243
      %277 = vst.msk [vmem:[%s265 + $0x82] sm:$0xff] %vm171, %v244
      %278 = vst.msk [vmem:[%s265 + $0x92] sm:$0xff] %vm171, %v245
      %279 = vst.msk [vmem:[%s265 + $0x9a] sm:$0xff] %vm171, %v246
      %280 = vst.msk [vmem:[%s265 + $0xaa] sm:$0xff] %vm171, %v247
      %281 = vst.msk [vmem:[%s265 + $0xb2] sm:$0xff] %vm171, %v248
      %282 = vst.msk [vmem:[%s265 + $0xc2] sm:$0xff] %vm171, %v249
      %283 = vst.msk [vmem:[%s265 + $0xca] sm:$0xff] %vm171, %v250
      %284 = vst.msk [vmem:[%s265 + $0xda] sm:$0xff] %vm171, %v251
      %285 = vst.msk [vmem:[%s265 + $0xe2] sm:$0xff] %vm171, %v252
      %286 = vst.msk [vmem:[%s265 + $0xf2] sm:$0xff] %vm171, %v253
      %287 = vst.msk [vmem:[%s265 + $0xfa] sm:$0xff] %vm171, %v254
      %288 = vst.msk [vmem:[%s265 + $0x10a] sm:$0xff] %vm171, %v255
      %289 = vst.msk [vmem:[%s265 + $0x112] sm:$0xff] %vm171, %v256
      %290 = vst.msk [vmem:[%s265 + $0x122] sm:$0xff] %vm171, %v257
      %291 = vst.msk [vmem:[%s265 + $0x12a] sm:$0xff] %vm171, %v258
      %292 = vst.msk [vmem:[%s265 + $0x13a] sm:$0xff] %vm171, %v259
      %293 = vst.msk [vmem:[%s265 + $0x142] sm:$0xff] %vm171, %v260
      %294 = vst.msk [vmem:[%s265 + $0x152] sm:$0xff] %vm171, %v261
      %295 = vst.msk [vmem:[%s265 + $0x15a] sm:$0xff] %vm171, %v262
      %296 = vst.msk [vmem:[%s265 + $0x16a] sm:$0xff] %vm171, %v263
      %297 = vst.msk [vmem:[%s265 + $0x172] sm:$0xff] %vm171, %v264
      %v298 = vld [vmem:[#allocation2] sm:$0xff]
      %v299 = vld [vmem:[#allocation2 + $0x8] sm:$0xff]
      %v300 = vld [vmem:[#allocation2 + $0x18] sm:$0xff]
      %v301 = vld [vmem:[#allocation2 + $0x20] sm:$0xff]
      %v302 = vld [vmem:[#allocation2 + $0x30] sm:$0xff]
      %v303 = vld [vmem:[#allocation2 + $0x38] sm:$0xff]
      %v304 = vld [vmem:[#allocation2 + $0x48] sm:$0xff]
      %v305 = vld [vmem:[#allocation2 + $0x50] sm:$0xff]
      %v306 = vld [vmem:[#allocation2 + $0x60] sm:$0xff]
      %v307 = vld [vmem:[#allocation2 + $0x68] sm:$0xff]
      %v308 = vld [vmem:[#allocation2 + $0x78] sm:$0xff]
      %v309 = vld [vmem:[#allocation2 + $0x80] sm:$0xff]
      %v310 = vld [vmem:[#allocation2 + $0x90] sm:$0xff]
      %v311 = vld [vmem:[#allocation2 + $0x98] sm:$0xff]
      %v312 = vld [vmem:[#allocation2 + $0xa8] sm:$0xff]
      %v313 = vld [vmem:[#allocation2 + $0xb0] sm:$0xff]
      %v314 = vld [vmem:[#allocation2 + $0xc0] sm:$0xff]
      %v315 = vld [vmem:[#allocation2 + $0xc8] sm:$0xff]
      %v316 = vld [vmem:[#allocation2 + $0xd8] sm:$0xff]
      %v317 = vld [vmem:[#allocation2 + $0xe0] sm:$0xff]
      %v318 = vld [vmem:[#allocation2 + $0xf0] sm:$0xff]
      %v319 = vld [vmem:[#allocation2 + $0xf8] sm:$0xff]
      %v320 = vld [vmem:[#allocation2 + $0x108] sm:$0xff]
      %v321 = vld [vmem:[#allocation2 + $0x110] sm:$0xff]
      %v322 = vld [vmem:[#allocation2 + $0x120] sm:$0xff]
      %v323 = vld [vmem:[#allocation2 + $0x128] sm:$0xff]
      %v324 = vld [vmem:[#allocation2 + $0x138] sm:$0xff]
      %v325 = vld [vmem:[#allocation2 + $0x140] sm:$0xff]
      %v326 = vld [vmem:[#allocation2 + $0x150] sm:$0xff]
      %v327 = vld [vmem:[#allocation2 + $0x158] sm:$0xff]
      %v328 = vld [vmem:[#allocation2 + $0x168] sm:$0xff]
      %v329 = vld [vmem:[#allocation2 + $0x170] sm:$0xff]
      %v330 = vld [vmem:[%s1] sm:$0x1]
      %v331 = vlaneseq
      %v332 = vshrl.u32 %v331, 7
      %v333 = vsub.s32 0, %v332
      %v334 = vrot.slane %v330, %v333
      %v335 = vmul.f32 %v298, %v334
      %v336 = vmul.f32 %v299, %v334
      %v337 = vmul.f32 %v300, %v334
      %v338 = vmul.f32 %v301, %v334
      %v339 = vmul.f32 %v302, %v334
      %v340 = vmul.f32 %v303, %v334
      %v341 = vmul.f32 %v304, %v334
      %v342 = vmul.f32 %v305, %v334
      %v343 = vmul.f32 %v306, %v334
      %v344 = vmul.f32 %v307, %v334
      %v345 = vmul.f32 %v308, %v334
      %v346 = vmul.f32 %v309, %v334
      %v347 = vmul.f32 %v310, %v334
      %v348 = vmul.f32 %v311, %v334
      %v349 = vmul.f32 %v312, %v334
      %v350 = vmul.f32 %v313, %v334
      %v351 = vmul.f32 %v314, %v334
      %v352 = vmul.f32 %v315, %v334
      %v353 = vmul.f32 %v316, %v334
      %v354 = vmul.f32 %v317, %v334
      %v355 = vmul.f32 %v318, %v334
      %v356 = vmul.f32 %v319, %v334
      %v357 = vmul.f32 %v320, %v334
      %v358 = vmul.f32 %v321, %v334
      %v359 = vmul.f32 %v322, %v334
      %v360 = vmul.f32 %v323, %v334
      %v361 = vmul.f32 %v324, %v334
      %v362 = vmul.f32 %v325, %v334
      %v363 = vmul.f32 %v326, %v334
      %v364 = vmul.f32 %v327, %v334
      %v365 = vmul.f32 %v328, %v334
      %v366 = vmul.f32 %v329, %v334
      %v367 = vadd.f32 %v335, 0.0
      %v368 = vadd.f32 %v336, 0.0
      %v369 = vadd.f32 %v337, 0.0
      %v370 = vadd.f32 %v338, 0.0
      %v371 = vadd.f32 %v339, 0.0
      %v372 = vadd.f32 %v340, 0.0
      %v373 = vadd.f32 %v341, 0.0
      %v374 = vadd.f32 %v342, 0.0
      %v375 = vadd.f32 %v343, 0.0
      %v376 = vadd.f32 %v344, 0.0
      %v377 = vadd.f32 %v345, 0.0
      %v378 = vadd.f32 %v346, 0.0
      %v379 = vadd.f32 %v347, 0.0
      %v380 = vadd.f32 %v348, 0.0
      %v381 = vadd.f32 %v349, 0.0
      %v382 = vadd.f32 %v350, 0.0
      %v383 = vadd.f32 %v351, 0.0
      %v384 = vadd.f32 %v352, 0.0
      %v385 = vadd.f32 %v353, 0.0
      %v386 = vadd.f32 %v354, 0.0
      %v387 = vadd.f32 %v355, 0.0
      %v388 = vadd.f32 %v356, 0.0
      %v389 = vadd.f32 %v357, 0.0
      %v390 = vadd.f32 %v358, 0.0
      %v391 = vadd.f32 %v359, 0.0
      %v392 = vadd.f32 %v360, 0.0
      %v393 = vadd.f32 %v361, 0.0
      %v394 = vadd.f32 %v362, 0.0
      %v395 = vadd.f32 %v363, 0.0
      %v396 = vadd.f32 %v364, 0.0
      %v397 = vadd.f32 %v365, 0.0
      %v398 = vadd.f32 %v366, 0.0
      %v399 = vld [vmem:[#allocation2 + $0x2] sm:$0xff]
      %v400 = vld [vmem:[#allocation2 + $0xa] sm:$0xff]
      %v401 = vld [vmem:[#allocation2 + $0x1a] sm:$0xff]
      %v402 = vld [vmem:[#allocation2 + $0x22] sm:$0xff]
      %v403 = vld [vmem:[#allocation2 + $0x32] sm:$0xff]
      %v404 = vld [vmem:[#allocation2 + $0x3a] sm:$0xff]
      %v405 = vld [vmem:[#allocation2 + $0x4a] sm:$0xff]
      %v406 = vld [vmem:[#allocation2 + $0x52] sm:$0xff]
      %v407 = vld [vmem:[#allocation2 + $0x62] sm:$0xff]
      %v408 = vld [vmem:[#allocation2 + $0x6a] sm:$0xff]
      %v409 = vld [vmem:[#allocation2 + $0x7a] sm:$0xff]
      %v410 = vld [vmem:[#allocation2 + $0x82] sm:$0xff]
      %v411 = vld [vmem:[#allocation2 + $0x92] sm:$0xff]
      %v412 = vld [vmem:[#allocation2 + $0x9a] sm:$0xff]
      %v413 = vld [vmem:[#allocation2 + $0xaa] sm:$0xff]
      %v414 = vld [vmem:[#allocation2 + $0xb2] sm:$0xff]
      %v415 = vld [vmem:[#allocation2 + $0xc2] sm:$0xff]
      %v416 = vld [vmem:[#allocation2 + $0xca] sm:$0xff]
      %v417 = vld [vmem:[#allocation2 + $0xda] sm:$0xff]
      %v418 = vld [vmem:[#allocation2 + $0xe2] sm:$0xff]
      %v419 = vld [vmem:[#allocation2 + $0xf2] sm:$0xff]
      %v420 = vld [vmem:[#allocation2 + $0xfa] sm:$0xff]
      %v421 = vld [vmem:[#allocation2 + $0x10a] sm:$0xff]
      %v422 = vld [vmem:[#allocation2 + $0x112] sm:$0xff]
      %v423 = vld [vmem:[#allocation2 + $0x122] sm:$0xff]
      %v424 = vld [vmem:[#allocation2 + $0x12a] sm:$0xff]
      %v425 = vld [vmem:[#allocation2 + $0x13a] sm:$0xff]
      %v426 = vld [vmem:[#allocation2 + $0x142] sm:$0xff]
      %v427 = vld [vmem:[#allocation2 + $0x152] sm:$0xff]
      %v428 = vld [vmem:[#allocation2 + $0x15a] sm:$0xff]
      %v429 = vld [vmem:[#allocation2 + $0x16a] sm:$0xff]
      %v430 = vld [vmem:[#allocation2 + $0x172] sm:$0xff]
      %v431 = vld [vmem:[%s1 + $0x1] sm:$0x1]
      %v432 = vlaneseq
      %v433 = vshrl.u32 %v432, 7
      %v434 = vsub.s32 0, %v433
      %v435 = vrot.slane %v431, %v434
      %v436 = vmul.f32 %v399, %v435
      %v437 = vmul.f32 %v400, %v435
      %v438 = vmul.f32 %v401, %v435
      %v439 = vmul.f32 %v402, %v435
      %v440 = vmul.f32 %v403, %v435
      %v441 = vmul.f32 %v404, %v435
      %v442 = vmul.f32 %v405, %v435
      %v443 = vmul.f32 %v406, %v435
      %v444 = vmul.f32 %v407, %v435
      %v445 = vmul.f32 %v408, %v435
      %v446 = vmul.f32 %v409, %v435
      %v447 = vmul.f32 %v410, %v435
      %v448 = vmul.f32 %v411, %v435
      %v449 = vmul.f32 %v412, %v435
      %v450 = vmul.f32 %v413, %v435
      %v451 = vmul.f32 %v414, %v435
      %v452 = vmul.f32 %v415, %v435
      %v453 = vmul.f32 %v416, %v435
      %v454 = vmul.f32 %v417, %v435
      %v455 = vmul.f32 %v418, %v435
      %v456 = vmul.f32 %v419, %v435
      %v457 = vmul.f32 %v420, %v435
      %v458 = vmul.f32 %v421, %v435
      %v459 = vmul.f32 %v422, %v435
      %v460 = vmul.f32 %v423, %v435
      %v461 = vmul.f32 %v424, %v435
      %v462 = vmul.f32 %v425, %v435
      %v463 = vmul.f32 %v426, %v435
      %v464 = vmul.f32 %v427, %v435
      %v465 = vmul.f32 %v428, %v435
      %v466 = vmul.f32 %v429, %v435
      %v467 = vmul.f32 %v430, %v435
      %v468 = vadd.f32 %v367, %v436
      %v469 = vadd.f32 %v368, %v437
      %v470 = vadd.f32 %v369, %v438
      %v471 = vadd.f32 %v370, %v439
      %v472 = vadd.f32 %v371, %v440
      %v473 = vadd.f32 %v372, %v441
      %v474 = vadd.f32 %v373, %v442
      %v475 = vadd.f32 %v374, %v443
      %v476 = vadd.f32 %v375, %v444
      %v477 = vadd.f32 %v376, %v445
      %v478 = vadd.f32 %v377, %v446
      %v479 = vadd.f32 %v378, %v447
      %v480 = vadd.f32 %v379, %v448
      %v481 = vadd.f32 %v380, %v449
      %v482 = vadd.f32 %v381, %v450
      %v483 = vadd.f32 %v382, %v451
      %v484 = vadd.f32 %v383, %v452
      %v485 = vadd.f32 %v384, %v453
      %v486 = vadd.f32 %v385, %v454
      %v487 = vadd.f32 %v386, %v455
      %v488 = vadd.f32 %v387, %v456
      %v489 = vadd.f32 %v388, %v457
      %v490 = vadd.f32 %v389, %v458
      %v491 = vadd.f32 %v390, %v459
      %v492 = vadd.f32 %v391, %v460
      %v493 = vadd.f32 %v392, %v461
      %v494 = vadd.f32 %v393, %v462
      %v495 = vadd.f32 %v394, %v463
      %v496 = vadd.f32 %v395, %v464
      %v497 = vadd.f32 %v396, %v465
      %v498 = vadd.f32 %v397, %v466
      %v499 = vadd.f32 %v398, %v467
      %v500 = vld [vmem:[#allocation2 + $0x4] sm:$0xff]
      %v501 = vld [vmem:[#allocation2 + $0xc] sm:$0xff]
      %v502 = vld [vmem:[#allocation2 + $0x1c] sm:$0xff]
      %v503 = vld [vmem:[#allocation2 + $0x24] sm:$0xff]
      %v504 = vld [vmem:[#allocation2 + $0x34] sm:$0xff]
      %v505 = vld [vmem:[#allocation2 + $0x3c] sm:$0xff]
      %v506 = vld [vmem:[#allocation2 + $0x4c] sm:$0xff]
      %v507 = vld [vmem:[#allocation2 + $0x54] sm:$0xff]
      %v508 = vld [vmem:[#allocation2 + $0x64] sm:$0xff]
      %v509 = vld [vmem:[#allocation2 + $0x6c] sm:$0xff]
      %v510 = vld [vmem:[#allocation2 + $0x7c] sm:$0xff]
      %v511 = vld [vmem:[#allocation2 + $0x84] sm:$0xff]
      %v512 = vld [vmem:[#allocation2 + $0x94] sm:$0xff]
      %v513 = vld [vmem:[#allocation2 + $0x9c] sm:$0xff]
      %v514 = vld [vmem:[#allocation2 + $0xac] sm:$0xff]
      %v515 = vld [vmem:[#allocation2 + $0xb4] sm:$0xff]
      %v516 = vld [vmem:[#allocation2 + $0xc4] sm:$0xff]
      %v517 = vld [vmem:[#allocation2 + $0xcc] sm:$0xff]
      %v518 = vld [vmem:[#allocation2 + $0xdc] sm:$0xff]
      %v519 = vld [vmem:[#allocation2 + $0xe4] sm:$0xff]
      %v520 = vld [vmem:[#allocation2 + $0xf4] sm:$0xff]
      %v521 = vld [vmem:[#allocation2 + $0xfc] sm:$0xff]
      %v522 = vld [vmem:[#allocation2 + $0x10c] sm:$0xff]
      %v523 = vld [vmem:[#allocation2 + $0x114] sm:$0xff]
      %v524 = vld [vmem:[#allocation2 + $0x124] sm:$0xff]
      %v525 = vld [vmem:[#allocation2 + $0x12c] sm:$0xff]
      %v526 = vld [vmem:[#allocation2 + $0x13c] sm:$0xff]
      %v527 = vld [vmem:[#allocation2 + $0x144] sm:$0xff]
      %v528 = vld [vmem:[#allocation2 + $0x154] sm:$0xff]
      %v529 = vld [vmem:[#allocation2 + $0x15c] sm:$0xff]
      %v530 = vld [vmem:[#allocation2 + $0x16c] sm:$0xff]
      %v531 = vld [vmem:[#allocation2 + $0x174] sm:$0xff]
      %v532 = vld [vmem:[%s1 + $0x2] sm:$0x1]
      %v533 = vlaneseq
      %v534 = vshrl.u32 %v533, 7
      %v535 = vsub.s32 0, %v534
      %v536 = vrot.slane %v532, %v535
      %v537 = vmul.f32 %v500, %v536
      %v538 = vmul.f32 %v501, %v536
      %v539 = vmul.f32 %v502, %v536
      %v540 = vmul.f32 %v503, %v536
      %v541 = vmul.f32 %v504, %v536
      %v542 = vmul.f32 %v505, %v536
      %v543 = vmul.f32 %v506, %v536
      %v544 = vmul.f32 %v507, %v536
      %v545 = vmul.f32 %v508, %v536
      %v546 = vmul.f32 %v509, %v536
      %v547 = vmul.f32 %v510, %v536
      %v548 = vmul.f32 %v511, %v536
      %v549 = vmul.f32 %v512, %v536
      %v550 = vmul.f32 %v513, %v536
      %v551 = vmul.f32 %v514, %v536
      %v552 = vmul.f32 %v515, %v536
      %v553 = vmul.f32 %v516, %v536
      %v554 = vmul.f32 %v517, %v536
      %v555 = vmul.f32 %v518, %v536
      %v556 = vmul.f32 %v519, %v536
      %v557 = vmul.f32 %v520, %v536
      %v558 = vmul.f32 %v521, %v536
      %v559 = vmul.f32 %v522, %v536
      %v560 = vmul.f32 %v523, %v536
      %v561 = vmul.f32 %v524, %v536
      %v562 = vmul.f32 %v525, %v536
      %v563 = vmul.f32 %v526, %v536
      %v564 = vmul.f32 %v527, %v536
      %v565 = vmul.f32 %v528, %v536
      %v566 = vmul.f32 %v529, %v536
      %v567 = vmul.f32 %v530, %v536
      %v568 = vmul.f32 %v531, %v536
      %v569 = vadd.f32 %v468, %v537
      %v570 = vadd.f32 %v469, %v538
      %v571 = vadd.f32 %v470, %v539
      %v572 = vadd.f32 %v471, %v540
      %v573 = vadd.f32 %v472, %v541
      %v574 = vadd.f32 %v473, %v542
      %v575 = vadd.f32 %v474, %v543
      %v576 = vadd.f32 %v475, %v544
      %v577 = vadd.f32 %v476, %v545
      %v578 = vadd.f32 %v477, %v546
      %v579 = vadd.f32 %v478, %v547
      %v580 = vadd.f32 %v479, %v548
      %v581 = vadd.f32 %v480, %v549
      %v582 = vadd.f32 %v481, %v550
      %v583 = vadd.f32 %v482, %v551
      %v584 = vadd.f32 %v483, %v552
      %v585 = vadd.f32 %v484, %v553
      %v586 = vadd.f32 %v485, %v554
      %v587 = vadd.f32 %v486, %v555
      %v588 = vadd.f32 %v487, %v556
      %v589 = vadd.f32 %v488, %v557
      %v590 = vadd.f32 %v489, %v558
      %v591 = vadd.f32 %v490, %v559
      %v592 = vadd.f32 %v491, %v560
      %v593 = vadd.f32 %v492, %v561
      %v594 = vadd.f32 %v493, %v562
      %v595 = vadd.f32 %v494, %v563
      %v596 = vadd.f32 %v495, %v564
      %v597 = vadd.f32 %v496, %v565
      %v598 = vadd.f32 %v497, %v566
      %v599 = vadd.f32 %v498, %v567
      %v600 = vadd.f32 %v499, %v568
      %v601 = vld [vmem:[%s265] sm:$0xff]
      %v602 = vld [vmem:[%s265 + $0x8] sm:$0xff]
      %v603 = vld [vmem:[%s265 + $0x18] sm:$0xff]
      %v604 = vld [vmem:[%s265 + $0x20] sm:$0xff]
      %v605 = vld [vmem:[%s265 + $0x30] sm:$0xff]
      %v606 = vld [vmem:[%s265 + $0x38] sm:$0xff]
      %v607 = vld [vmem:[%s265 + $0x48] sm:$0xff]
      %v608 = vld [vmem:[%s265 + $0x50] sm:$0xff]
      %v609 = vld [vmem:[%s265 + $0x60] sm:$0xff]
      %v610 = vld [vmem:[%s265 + $0x68] sm:$0xff]
      %v611 = vld [vmem:[%s265 + $0x78] sm:$0xff]
      %v612 = vld [vmem:[%s265 + $0x80] sm:$0xff]
      %v613 = vld [vmem:[%s265 + $0x90] sm:$0xff]
      %v614 = vld [vmem:[%s265 + $0x98] sm:$0xff]
      %v615 = vld [vmem:[%s265 + $0xa8] sm:$0xff]
      %v616 = vld [vmem:[%s265 + $0xb0] sm:$0xff]
      %v617 = vld [vmem:[%s265 + $0xc0] sm:$0xff]
      %v618 = vld [vmem:[%s265 + $0xc8] sm:$0xff]
      %v619 = vld [vmem:[%s265 + $0xd8] sm:$0xff]
      %v620 = vld [vmem:[%s265 + $0xe0] sm:$0xff]
      %v621 = vld [vmem:[%s265 + $0xf0] sm:$0xff]
      %v622 = vld [vmem:[%s265 + $0xf8] sm:$0xff]
      %v623 = vld [vmem:[%s265 + $0x108] sm:$0xff]
      %v624 = vld [vmem:[%s265 + $0x110] sm:$0xff]
      %v625 = vld [vmem:[%s265 + $0x120] sm:$0xff]
      %v626 = vld [vmem:[%s265 + $0x128] sm:$0xff]
      %v627 = vld [vmem:[%s265 + $0x138] sm:$0xff]
      %v628 = vld [vmem:[%s265 + $0x140] sm:$0xff]
      %v629 = vld [vmem:[%s265 + $0x150] sm:$0xff]
      %v630 = vld [vmem:[%s265 + $0x158] sm:$0xff]
      %v631 = vld [vmem:[%s265 + $0x168] sm:$0xff]
      %v632 = vld [vmem:[%s265 + $0x170] sm:$0xff]
      %s633 = scalar_lea.vmem %s1, 4
      %v634 = vld [vmem:[%s633] sm:$0x1]
      %v635 = vlaneseq
      %v636 = vshrl.u32 %v635, 7
      %v637 = vsub.s32 0, %v636
      %v638 = vrot.slane %v634, %v637
      %v639 = vmul.f32 %v601, %v638
      %v640 = vmul.f32 %v602, %v638
      %v641 = vmul.f32 %v603, %v638
      %v642 = vmul.f32 %v604, %v638
      %v643 = vmul.f32 %v605, %v638
      %v644 = vmul.f32 %v606, %v638
      %v645 = vmul.f32 %v607, %v638
      %v646 = vmul.f32 %v608, %v638
      %v647 = vmul.f32 %v609, %v638
      %v648 = vmul.f32 %v610, %v638
      %v649 = vmul.f32 %v611, %v638
      %v650 = vmul.f32 %v612, %v638
      %v651 = vmul.f32 %v613, %v638
      %v652 = vmul.f32 %v614, %v638
      %v653 = vmul.f32 %v615, %v638
      %v654 = vmul.f32 %v616, %v638
      %v655 = vmul.f32 %v617, %v638
      %v656 = vmul.f32 %v618, %v638
      %v657 = vmul.f32 %v619, %v638
      %v658 = vmul.f32 %v620, %v638
      %v659 = vmul.f32 %v621, %v638
      %v660 = vmul.f32 %v622, %v638
      %v661 = vmul.f32 %v623, %v638
      %v662 = vmul.f32 %v624, %v638
      %v663 = vmul.f32 %v625, %v638
      %v664 = vmul.f32 %v626, %v638
      %v665 = vmul.f32 %v627, %v638
      %v666 = vmul.f32 %v628, %v638
      %v667 = vmul.f32 %v629, %v638
      %v668 = vmul.f32 %v630, %v638
      %v669 = vmul.f32 %v631, %v638
      %v670 = vmul.f32 %v632, %v638
      %v671 = vadd.f32 %v569, %v639
      %v672 = vadd.f32 %v570, %v640
      %v673 = vadd.f32 %v571, %v641
      %v674 = vadd.f32 %v572, %v642
      %v675 = vadd.f32 %v573, %v643
      %v676 = vadd.f32 %v574, %v644
      %v677 = vadd.f32 %v575, %v645
      %v678 = vadd.f32 %v576, %v646
      %v679 = vadd.f32 %v577, %v647
      %v680 = vadd.f32 %v578, %v648
      %v681 = vadd.f32 %v579, %v649
      %v682 = vadd.f32 %v580, %v650
      %v683 = vadd.f32 %v581, %v651
      %v684 = vadd.f32 %v582, %v652
      %v685 = vadd.f32 %v583, %v653
      %v686 = vadd.f32 %v584, %v654
      %v687 = vadd.f32 %v585, %v655
      %v688 = vadd.f32 %v586, %v656
      %v689 = vadd.f32 %v587, %v657
      %v690 = vadd.f32 %v588, %v658
      %v691 = vadd.f32 %v589, %v659
      %v692 = vadd.f32 %v590, %v660
      %v693 = vadd.f32 %v591, %v661
      %v694 = vadd.f32 %v592, %v662
      %v695 = vadd.f32 %v593, %v663
      %v696 = vadd.f32 %v594, %v664
      %v697 = vadd.f32 %v595, %v665
      %v698 = vadd.f32 %v596, %v666
      %v699 = vadd.f32 %v597, %v667
      %v700 = vadd.f32 %v598, %v668
      %v701 = vadd.f32 %v599, %v669
      %v702 = vadd.f32 %v600, %v670
      %v703 = vld [vmem:[%s265 + $0x2] sm:$0xff]
      %v704 = vld [vmem:[%s265 + $0xa] sm:$0xff]
      %v705 = vld [vmem:[%s265 + $0x1a] sm:$0xff]
      %v706 = vld [vmem:[%s265 + $0x22] sm:$0xff]
      %v707 = vld [vmem:[%s265 + $0x32] sm:$0xff]
      %v708 = vld [vmem:[%s265 + $0x3a] sm:$0xff]
      %v709 = vld [vmem:[%s265 + $0x4a] sm:$0xff]
      %v710 = vld [vmem:[%s265 + $0x52] sm:$0xff]
      %v711 = vld [vmem:[%s265 + $0x62] sm:$0xff]
      %v712 = vld [vmem:[%s265 + $0x6a] sm:$0xff]
      %v713 = vld [vmem:[%s265 + $0x7a] sm:$0xff]
      %v714 = vld [vmem:[%s265 + $0x82] sm:$0xff]
      %v715 = vld [vmem:[%s265 + $0x92] sm:$0xff]
      %v716 = vld [vmem:[%s265 + $0x9a] sm:$0xff]
      %v717 = vld [vmem:[%s265 + $0xaa] sm:$0xff]
      %v718 = vld [vmem:[%s265 + $0xb2] sm:$0xff]
      %v719 = vld [vmem:[%s265 + $0xc2] sm:$0xff]
      %v720 = vld [vmem:[%s265 + $0xca] sm:$0xff]
      %v721 = vld [vmem:[%s265 + $0xda] sm:$0xff]
      %v722 = vld [vmem:[%s265 + $0xe2] sm:$0xff]
      %v723 = vld [vmem:[%s265 + $0xf2] sm:$0xff]
      %v724 = vld [vmem:[%s265 + $0xfa] sm:$0xff]
      %v725 = vld [vmem:[%s265 + $0x10a] sm:$0xff]
      %v726 = vld [vmem:[%s265 + $0x112] sm:$0xff]
      %v727 = vld [vmem:[%s265 + $0x122] sm:$0xff]
      %v728 = vld [vmem:[%s265 + $0x12a] sm:$0xff]
      %v729 = vld [vmem:[%s265 + $0x13a] sm:$0xff]
      %v730 = vld [vmem:[%s265 + $0x142] sm:$0xff]
      %v731 = vld [vmem:[%s265 + $0x152] sm:$0xff]
      %v732 = vld [vmem:[%s265 + $0x15a] sm:$0xff]
      %v733 = vld [vmem:[%s265 + $0x16a] sm:$0xff]
      %v734 = vld [vmem:[%s265 + $0x172] sm:$0xff]
      %v735 = vld [vmem:[%s633 + $0x1] sm:$0x1]
      %v736 = vlaneseq
      %v737 = vshrl.u32 %v736, 7
      %v738 = vsub.s32 0, %v737
      %v739 = vrot.slane %v735, %v738
      %v740 = vmul.f32 %v703, %v739
      %v741 = vmul.f32 %v704, %v739
      %v742 = vmul.f32 %v705, %v739
      %v743 = vmul.f32 %v706, %v739
      %v744 = vmul.f32 %v707, %v739
      %v745 = vmul.f32 %v708, %v739
      %v746 = vmul.f32 %v709, %v739
      %v747 = vmul.f32 %v710, %v739
      %v748 = vmul.f32 %v711, %v739
      %v749 = vmul.f32 %v712, %v739
      %v750 = vmul.f32 %v713, %v739
      %v751 = vmul.f32 %v714, %v739
      %v752 = vmul.f32 %v715, %v739
      %v753 = vmul.f32 %v716, %v739
      %v754 = vmul.f32 %v717, %v739
      %v755 = vmul.f32 %v718, %v739
      %v756 = vmul.f32 %v719, %v739
      %v757 = vmul.f32 %v720, %v739
      %v758 = vmul.f32 %v721, %v739
      %v759 = vmul.f32 %v722, %v739
      %v760 = vmul.f32 %v723, %v739
      %v761 = vmul.f32 %v724, %v739
      %v762 = vmul.f32 %v725, %v739
      %v763 = vmul.f32 %v726, %v739
      %v764 = vmul.f32 %v727, %v739
      %v765 = vmul.f32 %v728, %v739
      %v766 = vmul.f32 %v729, %v739
      %v767 = vmul.f32 %v730, %v739
      %v768 = vmul.f32 %v731, %v739
      %v769 = vmul.f32 %v732, %v739
      %v770 = vmul.f32 %v733, %v739
      %v771 = vmul.f32 %v734, %v739
      %v772 = vadd.f32 %v671, %v740
      %v773 = vadd.f32 %v672, %v741
      %v774 = vadd.f32 %v673, %v742
      %v775 = vadd.f32 %v674, %v743
      %v776 = vadd.f32 %v675, %v744
      %v777 = vadd.f32 %v676, %v745
      %v778 = vadd.f32 %v677, %v746
      %v779 = vadd.f32 %v678, %v747
      %v780 = vadd.f32 %v679, %v748
      %v781 = vadd.f32 %v680, %v749
      %v782 = vadd.f32 %v681, %v750
      %v783 = vadd.f32 %v682, %v751
      %v784 = vadd.f32 %v683, %v752
      %v785 = vadd.f32 %v684, %v753
      %v786 = vadd.f32 %v685, %v754
      %v787 = vadd.f32 %v686, %v755
      %v788 = vadd.f32 %v687, %v756
      %v789 = vadd.f32 %v688, %v757
      %v790 = vadd.f32 %v689, %v758
      %v791 = vadd.f32 %v690, %v759
      %v792 = vadd.f32 %v691, %v760
      %v793 = vadd.f32 %v692, %v761
      %v794 = vadd.f32 %v693, %v762
      %v795 = vadd.f32 %v694, %v763
      %v796 = vadd.f32 %v695, %v764
      %v797 = vadd.f32 %v696, %v765
      %v798 = vadd.f32 %v697, %v766
      %v799 = vadd.f32 %v698, %v767
      %v800 = vadd.f32 %v699, %v768
      %v801 = vadd.f32 %v700, %v769
      %v802 = vadd.f32 %v701, %v770
      %v803 = vadd.f32 %v702, %v771
      %v804 = vld [vmem:[%s265 + $0x4] sm:$0xff]
      %v805 = vld [vmem:[%s265 + $0xc] sm:$0xff]
      %v806 = vld [vmem:[%s265 + $0x1c] sm:$0xff]
      %v807 = vld [vmem:[%s265 + $0x24] sm:$0xff]
      %v808 = vld [vmem:[%s265 + $0x34] sm:$0xff]
      %v809 = vld [vmem:[%s265 + $0x3c] sm:$0xff]
      %v810 = vld [vmem:[%s265 + $0x4c] sm:$0xff]
      %v811 = vld [vmem:[%s265 + $0x54] sm:$0xff]
      %v812 = vld [vmem:[%s265 + $0x64] sm:$0xff]
      %v813 = vld [vmem:[%s265 + $0x6c] sm:$0xff]
      %v814 = vld [vmem:[%s265 + $0x7c] sm:$0xff]
      %v815 = vld [vmem:[%s265 + $0x84] sm:$0xff]
      %v816 = vld [vmem:[%s265 + $0x94] sm:$0xff]
      %v817 = vld [vmem:[%s265 + $0x9c] sm:$0xff]
      %v818 = vld [vmem:[%s265 + $0xac] sm:$0xff]
      %v819 = vld [vmem:[%s265 + $0xb4] sm:$0xff]
      %v820 = vld [vmem:[%s265 + $0xc4] sm:$0xff]
      %v821 = vld [vmem:[%s265 + $0xcc] sm:$0xff]
      %v822 = vld [vmem:[%s265 + $0xdc] sm:$0xff]
      %v823 = vld [vmem:[%s265 + $0xe4] sm:$0xff]
      %v824 = vld [vmem:[%s265 + $0xf4] sm:$0xff]
      %v825 = vld [vmem:[%s265 + $0xfc] sm:$0xff]
      %v826 = vld [vmem:[%s265 + $0x10c] sm:$0xff]
      %v827 = vld [vmem:[%s265 + $0x114] sm:$0xff]
      %v828 = vld [vmem:[%s265 + $0x124] sm:$0xff]
      %v829 = vld [vmem:[%s265 + $0x12c] sm:$0xff]
      %v830 = vld [vmem:[%s265 + $0x13c] sm:$0xff]
      %v831 = vld [vmem:[%s265 + $0x144] sm:$0xff]
      %v832 = vld [vmem:[%s265 + $0x154] sm:$0xff]
      %v833 = vld [vmem:[%s265 + $0x15c] sm:$0xff]
      %v834 = vld [vmem:[%s265 + $0x16c] sm:$0xff]
      %v835 = vld [vmem:[%s265 + $0x174] sm:$0xff]
      %v836 = vld [vmem:[%s633 + $0x2] sm:$0x1]
      %v837 = vlaneseq
      %v838 = vshrl.u32 %v837, 7
      %v839 = vsub.s32 0, %v838
      %v840 = vrot.slane %v836, %v839
      %v841 = vmul.f32 %v804, %v840
      %v842 = vmul.f32 %v805, %v840
      %v843 = vmul.f32 %v806, %v840
      %v844 = vmul.f32 %v807, %v840
      %v845 = vmul.f32 %v808, %v840
      %v846 = vmul.f32 %v809, %v840
      %v847 = vmul.f32 %v810, %v840
      %v848 = vmul.f32 %v811, %v840
      %v849 = vmul.f32 %v812, %v840
      %v850 = vmul.f32 %v813, %v840
      %v851 = vmul.f32 %v814, %v840
      %v852 = vmul.f32 %v815, %v840
      %v853 = vmul.f32 %v816, %v840
      %v854 = vmul.f32 %v817, %v840
      %v855 = vmul.f32 %v818, %v840
      %v856 = vmul.f32 %v819, %v840
      %v857 = vmul.f32 %v820, %v840
      %v858 = vmul.f32 %v821, %v840
      %v859 = vmul.f32 %v822, %v840
      %v860 = vmul.f32 %v823, %v840
      %v861 = vmul.f32 %v824, %v840
      %v862 = vmul.f32 %v825, %v840
      %v863 = vmul.f32 %v826, %v840
      %v864 = vmul.f32 %v827, %v840
      %v865 = vmul.f32 %v828, %v840
      %v866 = vmul.f32 %v829, %v840
      %v867 = vmul.f32 %v830, %v840
      %v868 = vmul.f32 %v831, %v840
      %v869 = vmul.f32 %v832, %v840
      %v870 = vmul.f32 %v833, %v840
      %v871 = vmul.f32 %v834, %v840
      %v872 = vmul.f32 %v835, %v840
      %v873 = vadd.f32 %v772, %v841
      %v874 = vadd.f32 %v773, %v842
      %v875 = vadd.f32 %v774, %v843
      %v876 = vadd.f32 %v775, %v844
      %v877 = vadd.f32 %v776, %v845
      %v878 = vadd.f32 %v777, %v846
      %v879 = vadd.f32 %v778, %v847
      %v880 = vadd.f32 %v779, %v848
      %v881 = vadd.f32 %v780, %v849
      %v882 = vadd.f32 %v781, %v850
      %v883 = vadd.f32 %v782, %v851
      %v884 = vadd.f32 %v783, %v852
      %v885 = vadd.f32 %v784, %v853
      %v886 = vadd.f32 %v785, %v854
      %v887 = vadd.f32 %v786, %v855
      %v888 = vadd.f32 %v787, %v856
      %v889 = vadd.f32 %v788, %v857
      %v890 = vadd.f32 %v789, %v858
      %v891 = vadd.f32 %v790, %v859
      %v892 = vadd.f32 %v791, %v860
      %v893 = vadd.f32 %v792, %v861
      %v894 = vadd.f32 %v793, %v862
      %v895 = vadd.f32 %v794, %v863
      %v896 = vadd.f32 %v795, %v864
      %v897 = vadd.f32 %v796, %v865
      %v898 = vadd.f32 %v797, %v866
      %v899 = vadd.f32 %v798, %v867
      %v900 = vadd.f32 %v799, %v868
      %v901 = vadd.f32 %v800, %v869
      %v902 = vadd.f32 %v801, %v870
      %v903 = vadd.f32 %v802, %v871
      %v904 = vadd.f32 %v803, %v872
      %s905 = scalar_lea.vmem [#allocation2], 96
      %v906 = vld [vmem:[%s905] sm:$0xff]
      %v907 = vld [vmem:[%s905 + $0x8] sm:$0xff]
      %v908 = vld [vmem:[%s905 + $0x18] sm:$0xff]
      %v909 = vld [vmem:[%s905 + $0x20] sm:$0xff]
      %v910 = vld [vmem:[%s905 + $0x30] sm:$0xff]
      %v911 = vld [vmem:[%s905 + $0x38] sm:$0xff]
      %v912 = vld [vmem:[%s905 + $0x48] sm:$0xff]
      %v913 = vld [vmem:[%s905 + $0x50] sm:$0xff]
      %v914 = vld [vmem:[%s905 + $0x60] sm:$0xff]
      %v915 = vld [vmem:[%s905 + $0x68] sm:$0xff]
      %v916 = vld [vmem:[%s905 + $0x78] sm:$0xff]
      %v917 = vld [vmem:[%s905 + $0x80] sm:$0xff]
      %v918 = vld [vmem:[%s905 + $0x90] sm:$0xff]
      %v919 = vld [vmem:[%s905 + $0x98] sm:$0xff]
      %v920 = vld [vmem:[%s905 + $0xa8] sm:$0xff]
      %v921 = vld [vmem:[%s905 + $0xb0] sm:$0xff]
      %v922 = vld [vmem:[%s905 + $0xc0] sm:$0xff]
      %v923 = vld [vmem:[%s905 + $0xc8] sm:$0xff]
      %v924 = vld [vmem:[%s905 + $0xd8] sm:$0xff]
      %v925 = vld [vmem:[%s905 + $0xe0] sm:$0xff]
      %v926 = vld [vmem:[%s905 + $0xf0] sm:$0xff]
      %v927 = vld [vmem:[%s905 + $0xf8] sm:$0xff]
      %v928 = vld [vmem:[%s905 + $0x108] sm:$0xff]
      %v929 = vld [vmem:[%s905 + $0x110] sm:$0xff]
      %v930 = vld [vmem:[%s905 + $0x120] sm:$0xff]
      %v931 = vld [vmem:[%s905 + $0x128] sm:$0xff]
      %v932 = vld [vmem:[%s905 + $0x138] sm:$0xff]
      %v933 = vld [vmem:[%s905 + $0x140] sm:$0xff]
      %v934 = vld [vmem:[%s905 + $0x150] sm:$0xff]
      %v935 = vld [vmem:[%s905 + $0x158] sm:$0xff]
      %v936 = vld [vmem:[%s905 + $0x168] sm:$0xff]
      %v937 = vld [vmem:[%s905 + $0x170] sm:$0xff]
      %s938 = scalar_lea.vmem %s1, 8
      %v939 = vld [vmem:[%s938] sm:$0x1]
      %v940 = vlaneseq
      %v941 = vshrl.u32 %v940, 7
      %v942 = vsub.s32 0, %v941
      %v943 = vrot.slane %v939, %v942
      %v944 = vmul.f32 %v906, %v943
      %v945 = vmul.f32 %v907, %v943
      %v946 = vmul.f32 %v908, %v943
      %v947 = vmul.f32 %v909, %v943
      %v948 = vmul.f32 %v910, %v943
      %v949 = vmul.f32 %v911, %v943
      %v950 = vmul.f32 %v912, %v943
      %v951 = vmul.f32 %v913, %v943
      %v952 = vmul.f32 %v914, %v943
      %v953 = vmul.f32 %v915, %v943
      %v954 = vmul.f32 %v916, %v943
      %v955 = vmul.f32 %v917, %v943
      %v956 = vmul.f32 %v918, %v943
      %v957 = vmul.f32 %v919, %v943
      %v958 = vmul.f32 %v920, %v943
      %v959 = vmul.f32 %v921, %v943
      %v960 = vmul.f32 %v922, %v943
      %v961 = vmul.f32 %v923, %v943
      %v962 = vmul.f32 %v924, %v943
      %v963 = vmul.f32 %v925, %v943
      %v964 = vmul.f32 %v926, %v943
      %v965 = vmul.f32 %v927, %v943
      %v966 = vmul.f32 %v928, %v943
      %v967 = vmul.f32 %v929, %v943
      %v968 = vmul.f32 %v930, %v943
      %v969 = vmul.f32 %v931, %v943
      %v970 = vmul.f32 %v932, %v943
      %v971 = vmul.f32 %v933, %v943
      %v972 = vmul.f32 %v934, %v943
      %v973 = vmul.f32 %v935, %v943
      %v974 = vmul.f32 %v936, %v943
      %v975 = vmul.f32 %v937, %v943
      %v976 = vadd.f32 %v873, %v944
      %v977 = vadd.f32 %v874, %v945
      %v978 = vadd.f32 %v875, %v946
      %v979 = vadd.f32 %v876, %v947
      %v980 = vadd.f32 %v877, %v948
      %v981 = vadd.f32 %v878, %v949
      %v982 = vadd.f32 %v879, %v950
      %v983 = vadd.f32 %v880, %v951
      %v984 = vadd.f32 %v881, %v952
      %v985 = vadd.f32 %v882, %v953
      %v986 = vadd.f32 %v883, %v954
      %v987 = vadd.f32 %v884, %v955
      %v988 = vadd.f32 %v885, %v956
      %v989 = vadd.f32 %v886, %v957
      %v990 = vadd.f32 %v887, %v958
      %v991 = vadd.f32 %v888, %v959
      %v992 = vadd.f32 %v889, %v960
      %v993 = vadd.f32 %v890, %v961
      %v994 = vadd.f32 %v891, %v962
      %v995 = vadd.f32 %v892, %v963
      %v996 = vadd.f32 %v893, %v964
      %v997 = vadd.f32 %v894, %v965
      %v998 = vadd.f32 %v895, %v966
      %v999 = vadd.f32 %v896, %v967
      %v1000 = vadd.f32 %v897, %v968
      %v1001 = vadd.f32 %v898, %v969
      %v1002 = vadd.f32 %v899, %v970
      %v1003 = vadd.f32 %v900, %v971
      %v1004 = vadd.f32 %v901, %v972
      %v1005 = vadd.f32 %v902, %v973
      %v1006 = vadd.f32 %v903, %v974
      %v1007 = vadd.f32 %v904, %v975
      %v1008 = vld [vmem:[%s905 + $0x2] sm:$0xff]
      %v1009 = vld [vmem:[%s905 + $0xa] sm:$0xff]
      %v1010 = vld [vmem:[%s905 + $0x1a] sm:$0xff]
      %v1011 = vld [vmem:[%s905 + $0x22] sm:$0xff]
      %v1012 = vld [vmem:[%s905 + $0x32] sm:$0xff]
      %v1013 = vld [vmem:[%s905 + $0x3a] sm:$0xff]
      %v1014 = vld [vmem:[%s905 + $0x4a] sm:$0xff]
      %v1015 = vld [vmem:[%s905 + $0x52] sm:$0xff]
      %v1016 = vld [vmem:[%s905 + $0x62] sm:$0xff]
      %v1017 = vld [vmem:[%s905 + $0x6a] sm:$0xff]
      %v1018 = vld [vmem:[%s905 + $0x7a] sm:$0xff]
      %v1019 = vld [vmem:[%s905 + $0x82] sm:$0xff]
      %v1020 = vld [vmem:[%s905 + $0x92] sm:$0xff]
      %v1021 = vld [vmem:[%s905 + $0x9a] sm:$0xff]
      %v1022 = vld [vmem:[%s905 + $0xaa] sm:$0xff]
      %v1023 = vld [vmem:[%s905 + $0xb2] sm:$0xff]
      %v1024 = vld [vmem:[%s905 + $0xc2] sm:$0xff]
      %v1025 = vld [vmem:[%s905 + $0xca] sm:$0xff]
      %v1026 = vld [vmem:[%s905 + $0xda] sm:$0xff]
      %v1027 = vld [vmem:[%s905 + $0xe2] sm:$0xff]
      %v1028 = vld [vmem:[%s905 + $0xf2] sm:$0xff]
      %v1029 = vld [vmem:[%s905 + $0xfa] sm:$0xff]
      %v1030 = vld [vmem:[%s905 + $0x10a] sm:$0xff]
      %v1031 = vld [vmem:[%s905 + $0x112] sm:$0xff]
      %v1032 = vld [vmem:[%s905 + $0x122] sm:$0xff]
      %v1033 = vld [vmem:[%s905 + $0x12a] sm:$0xff]
      %v1034 = vld [vmem:[%s905 + $0x13a] sm:$0xff]
      %v1035 = vld [vmem:[%s905 + $0x142] sm:$0xff]
      %v1036 = vld [vmem:[%s905 + $0x152] sm:$0xff]
      %v1037 = vld [vmem:[%s905 + $0x15a] sm:$0xff]
      %v1038 = vld [vmem:[%s905 + $0x16a] sm:$0xff]
      %v1039 = vld [vmem:[%s905 + $0x172] sm:$0xff]
      %v1040 = vld [vmem:[%s938 + $0x1] sm:$0x1]
      %v1041 = vlaneseq
      %v1042 = vshrl.u32 %v1041, 7
      %v1043 = vsub.s32 0, %v1042
      %v1044 = vrot.slane %v1040, %v1043
      %v1045 = vmul.f32 %v1008, %v1044
      %v1046 = vmul.f32 %v1009, %v1044
      %v1047 = vmul.f32 %v1010, %v1044
      %v1048 = vmul.f32 %v1011, %v1044
      %v1049 = vmul.f32 %v1012, %v1044
      %v1050 = vmul.f32 %v1013, %v1044
      %v1051 = vmul.f32 %v1014, %v1044
      %v1052 = vmul.f32 %v1015, %v1044
      %v1053 = vmul.f32 %v1016, %v1044
      %v1054 = vmul.f32 %v1017, %v1044
      %v1055 = vmul.f32 %v1018, %v1044
      %v1056 = vmul.f32 %v1019, %v1044
      %v1057 = vmul.f32 %v1020, %v1044
      %v1058 = vmul.f32 %v1021, %v1044
      %v1059 = vmul.f32 %v1022, %v1044
      %v1060 = vmul.f32 %v1023, %v1044
      %v1061 = vmul.f32 %v1024, %v1044
      %v1062 = vmul.f32 %v1025, %v1044
      %v1063 = vmul.f32 %v1026, %v1044
      %v1064 = vmul.f32 %v1027, %v1044
      %v1065 = vmul.f32 %v1028, %v1044
      %v1066 = vmul.f32 %v1029, %v1044
      %v1067 = vmul.f32 %v1030, %v1044
      %v1068 = vmul.f32 %v1031, %v1044
      %v1069 = vmul.f32 %v1032, %v1044
      %v1070 = vmul.f32 %v1033, %v1044
      %v1071 = vmul.f32 %v1034, %v1044
      %v1072 = vmul.f32 %v1035, %v1044
      %v1073 = vmul.f32 %v1036, %v1044
      %v1074 = vmul.f32 %v1037, %v1044
      %v1075 = vmul.f32 %v1038, %v1044
      %v1076 = vmul.f32 %v1039, %v1044
      %v1077 = vadd.f32 %v976, %v1045
      %v1078 = vadd.f32 %v977, %v1046
      %v1079 = vadd.f32 %v978, %v1047
      %v1080 = vadd.f32 %v979, %v1048
      %v1081 = vadd.f32 %v980, %v1049
      %v1082 = vadd.f32 %v981, %v1050
      %v1083 = vadd.f32 %v982, %v1051
      %v1084 = vadd.f32 %v983, %v1052
      %v1085 = vadd.f32 %v984, %v1053
      %v1086 = vadd.f32 %v985, %v1054
      %v1087 = vadd.f32 %v986, %v1055
      %v1088 = vadd.f32 %v987, %v1056
      %v1089 = vadd.f32 %v988, %v1057
      %v1090 = vadd.f32 %v989, %v1058
      %v1091 = vadd.f32 %v990, %v1059
      %v1092 = vadd.f32 %v991, %v1060
      %v1093 = vadd.f32 %v992, %v1061
      %v1094 = vadd.f32 %v993, %v1062
      %v1095 = vadd.f32 %v994, %v1063
      %v1096 = vadd.f32 %v995, %v1064
      %v1097 = vadd.f32 %v996, %v1065
      %v1098 = vadd.f32 %v997, %v1066
      %v1099 = vadd.f32 %v998, %v1067
      %v1100 = vadd.f32 %v999, %v1068
      %v1101 = vadd.f32 %v1000, %v1069
      %v1102 = vadd.f32 %v1001, %v1070
      %v1103 = vadd.f32 %v1002, %v1071
      %v1104 = vadd.f32 %v1003, %v1072
      %v1105 = vadd.f32 %v1004, %v1073
      %v1106 = vadd.f32 %v1005, %v1074
      %v1107 = vadd.f32 %v1006, %v1075
      %v1108 = vadd.f32 %v1007, %v1076
      %v1109 = vld [vmem:[%s905 + $0x4] sm:$0xff]
      %v1110 = vld [vmem:[%s905 + $0xc] sm:$0xff]
      %v1111 = vld [vmem:[%s905 + $0x1c] sm:$0xff]
      %v1112 = vld [vmem:[%s905 + $0x24] sm:$0xff]
      %v1113 = vld [vmem:[%s905 + $0x34] sm:$0xff]
      %v1114 = vld [vmem:[%s905 + $0x3c] sm:$0xff]
      %v1115 = vld [vmem:[%s905 + $0x4c] sm:$0xff]
      %v1116 = vld [vmem:[%s905 + $0x54] sm:$0xff]
      %v1117 = vld [vmem:[%s905 + $0x64] sm:$0xff]
      %v1118 = vld [vmem:[%s905 + $0x6c] sm:$0xff]
      %v1119 = vld [vmem:[%s905 + $0x7c] sm:$0xff]
      %v1120 = vld [vmem:[%s905 + $0x84] sm:$0xff]
      %v1121 = vld [vmem:[%s905 + $0x94] sm:$0xff]
      %v1122 = vld [vmem:[%s905 + $0x9c] sm:$0xff]
      %v1123 = vld [vmem:[%s905 + $0xac] sm:$0xff]
      %v1124 = vld [vmem:[%s905 + $0xb4] sm:$0xff]
      %v1125 = vld [vmem:[%s905 + $0xc4] sm:$0xff]
      %v1126 = vld [vmem:[%s905 + $0xcc] sm:$0xff]
      %v1127 = vld [vmem:[%s905 + $0xdc] sm:$0xff]
      %v1128 = vld [vmem:[%s905 + $0xe4] sm:$0xff]
      %v1129 = vld [vmem:[%s905 + $0xf4] sm:$0xff]
      %v1130 = vld [vmem:[%s905 + $0xfc] sm:$0xff]
      %v1131 = vld [vmem:[%s905 + $0x10c] sm:$0xff]
      %v1132 = vld [vmem:[%s905 + $0x114] sm:$0xff]
      %v1133 = vld [vmem:[%s905 + $0x124] sm:$0xff]
      %v1134 = vld [vmem:[%s905 + $0x12c] sm:$0xff]
      %v1135 = vld [vmem:[%s905 + $0x13c] sm:$0xff]
      %v1136 = vld [vmem:[%s905 + $0x144] sm:$0xff]
      %v1137 = vld [vmem:[%s905 + $0x154] sm:$0xff]
      %v1138 = vld [vmem:[%s905 + $0x15c] sm:$0xff]
      %v1139 = vld [vmem:[%s905 + $0x16c] sm:$0xff]
      %v1140 = vld [vmem:[%s905 + $0x174] sm:$0xff]
      %v1141 = vld [vmem:[%s938 + $0x2] sm:$0x1]
      %v1142 = vlaneseq
      %v1143 = vshrl.u32 %v1142, 7
      %v1144 = vsub.s32 0, %v1143
      %v1145 = vrot.slane %v1141, %v1144
      %v1146 = vmul.f32 %v1109, %v1145
      %v1147 = vmul.f32 %v1110, %v1145
      %v1148 = vmul.f32 %v1111, %v1145
      %v1149 = vmul.f32 %v1112, %v1145
      %v1150 = vmul.f32 %v1113, %v1145
      %v1151 = vmul.f32 %v1114, %v1145
      %v1152 = vmul.f32 %v1115, %v1145
      %v1153 = vmul.f32 %v1116, %v1145
      %v1154 = vmul.f32 %v1117, %v1145
      %v1155 = vmul.f32 %v1118, %v1145
      %v1156 = vmul.f32 %v1119, %v1145
      %v1157 = vmul.f32 %v1120, %v1145
      %v1158 = vmul.f32 %v1121, %v1145
      %v1159 = vmul.f32 %v1122, %v1145
      %v1160 = vmul.f32 %v1123, %v1145
      %v1161 = vmul.f32 %v1124, %v1145
      %v1162 = vmul.f32 %v1125, %v1145
      %v1163 = vmul.f32 %v1126, %v1145
      %v1164 = vmul.f32 %v1127, %v1145
      %v1165 = vmul.f32 %v1128, %v1145
      %v1166 = vmul.f32 %v1129, %v1145
      %v1167 = vmul.f32 %v1130, %v1145
      %v1168 = vmul.f32 %v1131, %v1145
      %v1169 = vmul.f32 %v1132, %v1145
      %v1170 = vmul.f32 %v1133, %v1145
      %v1171 = vmul.f32 %v1134, %v1145
      %v1172 = vmul.f32 %v1135, %v1145
      %v1173 = vmul.f32 %v1136, %v1145
      %v1174 = vmul.f32 %v1137, %v1145
      %v1175 = vmul.f32 %v1138, %v1145
      %v1176 = vmul.f32 %v1139, %v1145
      %v1177 = vmul.f32 %v1140, %v1145
      %v1178 = vadd.f32 %v1077, %v1146
      %v1179 = vadd.f32 %v1078, %v1147
      %v1180 = vadd.f32 %v1079, %v1148
      %v1181 = vadd.f32 %v1080, %v1149
      %v1182 = vadd.f32 %v1081, %v1150
      %v1183 = vadd.f32 %v1082, %v1151
      %v1184 = vadd.f32 %v1083, %v1152
      %v1185 = vadd.f32 %v1084, %v1153
      %v1186 = vadd.f32 %v1085, %v1154
      %v1187 = vadd.f32 %v1086, %v1155
      %v1188 = vadd.f32 %v1087, %v1156
      %v1189 = vadd.f32 %v1088, %v1157
      %v1190 = vadd.f32 %v1089, %v1158
      %v1191 = vadd.f32 %v1090, %v1159
      %v1192 = vadd.f32 %v1091, %v1160
      %v1193 = vadd.f32 %v1092, %v1161
      %v1194 = vadd.f32 %v1093, %v1162
      %v1195 = vadd.f32 %v1094, %v1163
      %v1196 = vadd.f32 %v1095, %v1164
      %v1197 = vadd.f32 %v1096, %v1165
      %v1198 = vadd.f32 %v1097, %v1166
      %v1199 = vadd.f32 %v1098, %v1167
      %v1200 = vadd.f32 %v1099, %v1168
      %v1201 = vadd.f32 %v1100, %v1169
      %v1202 = vadd.f32 %v1101, %v1170
      %v1203 = vadd.f32 %v1102, %v1171
      %v1204 = vadd.f32 %v1103, %v1172
      %v1205 = vadd.f32 %v1104, %v1173
      %v1206 = vadd.f32 %v1105, %v1174
      %v1207 = vadd.f32 %v1106, %v1175
      %v1208 = vadd.f32 %v1107, %v1176
      %v1209 = vadd.f32 %v1108, %v1177
      %v1210 = vld [vmem:[%s2] sm:$0xff]
      %v1212 = vsel %vm171, %v1178, 0
      %v1215 = vsel %vm171, %v1179, 0
      %v1218 = vsel %vm171, %v1180, 0
      %v1221 = vsel %vm171, %v1181, 0
      %v1224 = vsel %vm171, %v1182, 0
      %v1227 = vsel %vm171, %v1183, 0
      %v1230 = vsel %vm171, %v1184, 0
      %v1233 = vsel %vm171, %v1185, 0
      %v1236 = vsel %vm171, %v1186, 0
      %v1239 = vsel %vm171, %v1187, 0
      %v1242 = vsel %vm171, %v1188, 0
      %v1245 = vsel %vm171, %v1189, 0
      %v1248 = vsel %vm171, %v1190, 0
      %v1251 = vsel %vm171, %v1191, 0
      %v1254 = vsel %vm171, %v1192, 0
      %v1257 = vsel %vm171, %v1193, 0
      %v1260 = vsel %vm171, %v1194, 0
      %v1263 = vsel %vm171, %v1195, 0
      %v1266 = vsel %vm171, %v1196, 0
      %v1269 = vsel %vm171, %v1197, 0
      %v1272 = vsel %vm171, %v1198, 0
      %v1275 = vsel %vm171, %v1199, 0
      %v1278 = vsel %vm171, %v1200, 0
      %v1281 = vsel %vm171, %v1201, 0
      %v1284 = vsel %vm171, %v1202, 0
      %v1287 = vsel %vm171, %v1203, 0
      %v1290 = vsel %vm171, %v1204, 0
      %v1293 = vsel %vm171, %v1205, 0
      %v1296 = vsel %vm171, %v1206, 0
      %v1299 = vsel %vm171, %v1207, 0
      %v1302 = vsel %vm171, %v1208, 0
      %v1305 = vsel %vm171, %v1209, 0
      %1307 = vmatprep.subr.mxu0 0.0
      %1308 = vmatpush1.msra.mxu0 %v1210
      %1309 = vmatprep.subr.mxu0 0.0
      %1310 = vmatpush1.msra.mxu0 0.0
      %1311 = vmatprep.subr.mxu0 0.0
      %1312 = vmatpush1.msra.mxu0 0.0
      %1313 = vmatprep.subr.mxu0 0.0
      %1314 = vmatpush1.msra.mxu0 0.0
      %1315 = vmatprep.subr.mxu0 0.0
      %1316 = vmatpush1.msra.mxu0 0.0
      %1317 = vmatprep.subr.mxu0 0.0
      %1318 = vmatpush1.msra.mxu0 0.0
      %1319 = vmatprep.subr.mxu0 0.0
      %1320 = vmatpush1.msra.mxu0 0.0
      %1321 = vmatprep.subr.mxu0 0.0
      %1322 = vmatpush1.msra.mxu0 0.0
      %1323 = vmatprep.subr.mxu0 0.0
      %1324 = vmatpush1.msra.mxu0 0.0
      %1325 = vmatprep.subr.mxu0 0.0
      %1326 = vmatpush1.msra.mxu0 0.0
      %1327 = vmatprep.subr.mxu0 0.0
      %1328 = vmatpush1.msra.mxu0 0.0
      %1329 = vmatprep.subr.mxu0 0.0
      %1330 = vmatpush1.msra.mxu0 0.0
      %1331 = vmatprep.subr.mxu0 0.0
      %1332 = vmatpush1.msra.mxu0 0.0
      %1333 = vmatprep.subr.mxu0 0.0
      %1334 = vmatpush1.msra.mxu0 0.0
      %1335 = vmatprep.subr.mxu0 0.0
      %1336 = vmatpush1.msra.mxu0 0.0
      %1337 = vmatprep.subr.mxu0 0.0
      %1338 = vmatpush1.msra.mxu0 0.0
      %1339 = vmatprep.subr.mxu0 0.0
      %1340 = vmatpush1.msra.mxu0 0.0
      %1341 = vmatprep.subr.mxu0 0.0
      %1342 = vmatpush1.msra.mxu0 0.0
      %1343 = vmatprep.subr.mxu0 0.0
      %1344 = vmatpush1.msra.mxu0 0.0
      %1345 = vmatprep.subr.mxu0 0.0
      %1346 = vmatpush1.msra.mxu0 0.0
      %1347 = vmatprep.subr.mxu0 0.0
      %1348 = vmatpush1.msra.mxu0 0.0
      %1349 = vmatprep.subr.mxu0 0.0
      %1350 = vmatpush1.msra.mxu0 0.0
      %1351 = vmatprep.subr.mxu0 0.0
      %1352 = vmatpush1.msra.mxu0 0.0
      %1353 = vmatprep.subr.mxu0 0.0
      %1354 = vmatpush1.msra.mxu0 0.0
      %1355 = vmatprep.subr.mxu0 0.0
      %1356 = vmatpush1.msra.mxu0 0.0
      %1357 = vmatprep.subr.mxu0 0.0
      %1358 = vmatpush1.msra.mxu0 0.0
      %1359 = vmatprep.subr.mxu0 0.0
      %1360 = vmatpush1.msra.mxu0 0.0
      %1361 = vmatprep.subr.mxu0 0.0
      %1362 = vmatpush1.msra.mxu0 0.0
      %1363 = vmatprep.subr.mxu0 0.0
      %1364 = vmatpush1.msra.mxu0 0.0
      %1365 = vmatprep.subr.mxu0 0.0
      %1366 = vmatpush1.msra.mxu0 0.0
      %1367 = vmatprep.subr.mxu0 0.0
      %1368 = vmatpush1.msra.mxu0 0.0
      %1369 = vmatprep.subr.mxu0 0.0
      %1370 = vmatpush1.msra.mxu0 0.0
      %1371 = vmatprep.mubr.f32.mxu0 0.0
      %1372 = vmatmul.mubr.f32.gmra.mrb[0].mxu0 %v1212
      %v1373 = vpop.f32.mrb[0].mxu0
      %v1374 = vadd.f32 0.0, %v1373
      %v1375 = vpop.f32.mrb[0].mxu0
      %1376 = vmatprep.mubr.f32.mxu0 0.0
      %1377 = vmatmul.mubr.f32.gmra.mrb[0].mxu0 %v1215
      %v1378 = vpop.f32.mrb[0].mxu0
      %v1379 = vadd.f32 0.0, %v1378
      %v1380 = vpop.f32.mrb[0].mxu0
      %1381 = vmatprep.mubr.f32.mxu0 0.0
      %1382 = vmatmul.mubr.f32.gmra.mrb[0].mxu0 %v1218
      %v1383 = vpop.f32.mrb[0].mxu0
      %v1384 = vadd.f32 0.0, %v1383
      %v1385 = vpop.f32.mrb[0].mxu0
      %1386 = vmatprep.mubr.f32.mxu0 0.0
      %1387 = vmatmul.mubr.f32.gmra.mrb[0].mxu0 %v1221
      %v1388 = vpop.f32.mrb[0].mxu0
      %v1389 = vadd.f32 0.0, %v1388
      %v1390 = vpop.f32.mrb[0].mxu0
      %1391 = vmatprep.mubr.f32.mxu0 0.0
      %1392 = vmatmul.mubr.f32.gmra.mrb[0].mxu0 %v1224
      %v1393 = vpop.f32.mrb[0].mxu0
      %v1394 = vadd.f32 0.0, %v1393
      %v1395 = vpop.f32.mrb[0].mxu0
      %1396 = vmatprep.mubr.f32.mxu0 0.0
      %1397 = vmatmul.mubr.f32.gmra.mrb[0].mxu0 %v1227
      %v1398 = vpop.f32.mrb[0].mxu0
      %v1399 = vadd.f32 0.0, %v1398
      %v1400 = vpop.f32.mrb[0].mxu0
      %1401 = vmatprep.mubr.f32.mxu0 0.0
      %1402 = vmatmul.mubr.f32.gmra.mrb[0].mxu0 %v1230
      %v1403 = vpop.f32.mrb[0].mxu0
      %v1404 = vadd.f32 0.0, %v1403
      %v1405 = vpop.f32.mrb[0].mxu0
      %1406 = vmatprep.mubr.f32.mxu0 0.0
      %1407 = vmatmul.mubr.f32.gmra.mrb[0].mxu0 %v1233
      %v1408 = vpop.f32.mrb[0].mxu0
      %v1409 = vadd.f32 0.0, %v1408
      %v1410 = vpop.f32.mrb[0].mxu0
      %1411 = vmatprep.mubr.f32.mxu0 0.0
      %1412 = vmatmul.mubr.f32.gmra.mrb[0].mxu0 %v1236
      %v1413 = vpop.f32.mrb[0].mxu0
      %v1414 = vadd.f32 0.0, %v1413
      %v1415 = vpop.f32.mrb[0].mxu0
      %1416 = vmatprep.mubr.f32.mxu0 0.0
      %1417 = vmatmul.mubr.f32.gmra.mrb[0].mxu0 %v1239
      %v1418 = vpop.f32.mrb[0].mxu0
      %v1419 = vadd.f32 0.0, %v1418
      %v1420 = vpop.f32.mrb[0].mxu0
      %1421 = vmatprep.mubr.f32.mxu0 0.0
      %1422 = vmatmul.mubr.f32.gmra.mrb[0].mxu0 %v1242
      %v1423 = vpop.f32.mrb[0].mxu0
      %v1424 = vadd.f32 0.0, %v1423
      %v1425 = vpop.f32.mrb[0].mxu0
      %1426 = vmatprep.mubr.f32.mxu0 0.0
      %1427 = vmatmul.mubr.f32.gmra.mrb[0].mxu0 %v1245
      %v1428 = vpop.f32.mrb[0].mxu0
      %v1429 = vadd.f32 0.0, %v1428
      %v1430 = vpop.f32.mrb[0].mxu0
      %1431 = vmatprep.mubr.f32.mxu0 0.0
      %1432 = vmatmul.mubr.f32.gmra.mrb[0].mxu0 %v1248
      %v1433 = vpop.f32.mrb[0].mxu0
      %v1434 = vadd.f32 0.0, %v1433
      %v1435 = vpop.f32.mrb[0].mxu0
      %1436 = vmatprep.mubr.f32.mxu0 0.0
      %1437 = vmatmul.mubr.f32.gmra.mrb[0].mxu0 %v1251
      %v1438 = vpop.f32.mrb[0].mxu0
      %v1439 = vadd.f32 0.0, %v1438
      %v1440 = vpop.f32.mrb[0].mxu0
      %1441 = vmatprep.mubr.f32.mxu0 0.0
      %1442 = vmatmul.mubr.f32.gmra.mrb[0].mxu0 %v1254
      %v1443 = vpop.f32.mrb[0].mxu0
      %v1444 = vadd.f32 0.0, %v1443
      %v1445 = vpop.f32.mrb[0].mxu0
      %1446 = vmatprep.mubr.f32.mxu0 0.0
      %1447 = vmatmul.mubr.f32.gmra.mrb[0].mxu0 %v1257
      %v1448 = vpop.f32.mrb[0].mxu0
      %v1449 = vadd.f32 0.0, %v1448
      %v1450 = vpop.f32.mrb[0].mxu0
      %1451 = vmatprep.mubr.f32.mxu0 0.0
      %1452 = vmatmul.mubr.f32.gmra.mrb[0].mxu0 %v1260
      %v1453 = vpop.f32.mrb[0].mxu0
      %v1454 = vadd.f32 0.0, %v1453
      %v1455 = vpop.f32.mrb[0].mxu0
      %1456 = vmatprep.mubr.f32.mxu0 0.0
      %1457 = vmatmul.mubr.f32.gmra.mrb[0].mxu0 %v1263
      %v1458 = vpop.f32.mrb[0].mxu0
      %v1459 = vadd.f32 0.0, %v1458
      %v1460 = vpop.f32.mrb[0].mxu0
      %1461 = vmatprep.mubr.f32.mxu0 0.0
      %1462 = vmatmul.mubr.f32.gmra.mrb[0].mxu0 %v1266
      %v1463 = vpop.f32.mrb[0].mxu0
      %v1464 = vadd.f32 0.0, %v1463
      %v1465 = vpop.f32.mrb[0].mxu0
      %1466 = vmatprep.mubr.f32.mxu0 0.0
      %1467 = vmatmul.mubr.f32.gmra.mrb[0].mxu0 %v1269
      %v1468 = vpop.f32.mrb[0].mxu0
      %v1469 = vadd.f32 0.0, %v1468
      %v1470 = vpop.f32.mrb[0].mxu0
      %1471 = vmatprep.mubr.f32.mxu0 0.0
      %1472 = vmatmul.mubr.f32.gmra.mrb[0].mxu0 %v1272
      %v1473 = vpop.f32.mrb[0].mxu0
      %v1474 = vadd.f32 0.0, %v1473
      %v1475 = vpop.f32.mrb[0].mxu0
      %1476 = vmatprep.mubr.f32.mxu0 0.0
      %1477 = vmatmul.mubr.f32.gmra.mrb[0].mxu0 %v1275
      %v1478 = vpop.f32.mrb[0].mxu0
      %v1479 = vadd.f32 0.0, %v1478
      %v1480 = vpop.f32.mrb[0].mxu0
      %1481 = vmatprep.mubr.f32.mxu0 0.0
      %1482 = vmatmul.mubr.f32.gmra.mrb[0].mxu0 %v1278
      %v1483 = vpop.f32.mrb[0].mxu0
      %v1484 = vadd.f32 0.0, %v1483
      %v1485 = vpop.f32.mrb[0].mxu0
      %1486 = vmatprep.mubr.f32.mxu0 0.0
      %1487 = vmatmul.mubr.f32.gmra.mrb[0].mxu0 %v1281
      %v1488 = vpop.f32.mrb[0].mxu0
      %v1489 = vadd.f32 0.0, %v1488
      %v1490 = vpop.f32.mrb[0].mxu0
      %1491 = vmatprep.mubr.f32.mxu0 0.0
      %1492 = vmatmul.mubr.f32.gmra.mrb[0].mxu0 %v1284
      %v1493 = vpop.f32.mrb[0].mxu0
      %v1494 = vadd.f32 0.0, %v1493
      %v1495 = vpop.f32.mrb[0].mxu0
      %1496 = vmatprep.mubr.f32.mxu0 0.0
      %1497 = vmatmul.mubr.f32.gmra.mrb[0].mxu0 %v1287
      %v1498 = vpop.f32.mrb[0].mxu0
      %v1499 = vadd.f32 0.0, %v1498
      %v1500 = vpop.f32.mrb[0].mxu0
      %1501 = vmatprep.mubr.f32.mxu0 0.0
      %1502 = vmatmul.mubr.f32.gmra.mrb[0].mxu0 %v1290
      %v1503 = vpop.f32.mrb[0].mxu0
      %v1504 = vadd.f32 0.0, %v1503
      %v1505 = vpop.f32.mrb[0].mxu0
      %1506 = vmatprep.mubr.f32.mxu0 0.0
      %1507 = vmatmul.mubr.f32.gmra.mrb[0].mxu0 %v1293
      %v1508 = vpop.f32.mrb[0].mxu0
      %v1509 = vadd.f32 0.0, %v1508
      %v1510 = vpop.f32.mrb[0].mxu0
      %1511 = vmatprep.mubr.f32.mxu0 0.0
      %1512 = vmatmul.mubr.f32.gmra.mrb[0].mxu0 %v1296
      %v1513 = vpop.f32.mrb[0].mxu0
      %v1514 = vadd.f32 0.0, %v1513
      %v1515 = vpop.f32.mrb[0].mxu0
      %1516 = vmatprep.mubr.f32.mxu0 0.0
      %1517 = vmatmul.mubr.f32.gmra.mrb[0].mxu0 %v1299
      %v1518 = vpop.f32.mrb[0].mxu0
      %v1519 = vadd.f32 0.0, %v1518
      %v1520 = vpop.f32.mrb[0].mxu0
      %1521 = vmatprep.mubr.f32.mxu0 0.0
      %1522 = vmatmul.mubr.f32.gmra.mrb[0].mxu0 %v1302
      %v1523 = vpop.f32.mrb[0].mxu0
      %v1524 = vadd.f32 0.0, %v1523
      %v1525 = vpop.f32.mrb[0].mxu0
      %1526 = vmatprep.mubr.f32.mxu0 0.0
      %1527 = vmatmul.mubr.f32.gmra.mrb[0].mxu0 %v1305
      %v1528 = vpop.f32.mrb[0].mxu0
      %v1529 = vadd.f32 0.0, %v1528
      %v1530 = vpop.f32.mrb[0].mxu0
      %1531 = vdwg.mxu0
      %1532 = vst.msk [vmem:[%s170] sm:$0xff] %vm171, %v1374
      %1533 = vst.msk [vmem:[%s170 + $0x8] sm:$0xff] %vm171, %v1379
      %1534 = vst.msk [vmem:[%s170 + $0x10] sm:$0xff] %vm171, %v1384
      %1535 = vst.msk [vmem:[%s170 + $0x18] sm:$0xff] %vm171, %v1389
      %1536 = vst.msk [vmem:[%s170 + $0x20] sm:$0xff] %vm171, %v1394
      %1537 = vst.msk [vmem:[%s170 + $0x28] sm:$0xff] %vm171, %v1399
      %1538 = vst.msk [vmem:[%s170 + $0x30] sm:$0xff] %vm171, %v1404
      %1539 = vst.msk [vmem:[%s170 + $0x38] sm:$0xff] %vm171, %v1409
      %1540 = vst.msk [vmem:[%s170 + $0x40] sm:$0xff] %vm171, %v1414
      %1541 = vst.msk [vmem:[%s170 + $0x48] sm:$0xff] %vm171, %v1419
      %1542 = vst.msk [vmem:[%s170 + $0x50] sm:$0xff] %vm171, %v1424
      %1543 = vst.msk [vmem:[%s170 + $0x58] sm:$0xff] %vm171, %v1429
      %1544 = vst.msk [vmem:[%s170 + $0x60] sm:$0xff] %vm171, %v1434
      %1545 = vst.msk [vmem:[%s170 + $0x68] sm:$0xff] %vm171, %v1439
      %1546 = vst.msk [vmem:[%s170 + $0x70] sm:$0xff] %vm171, %v1444
      %1547 = vst.msk [vmem:[%s170 + $0x78] sm:$0xff] %vm171, %v1449
      %1548 = vst.msk [vmem:[%s170 + $0x80] sm:$0xff] %vm171, %v1454
      %1549 = vst.msk [vmem:[%s170 + $0x88] sm:$0xff] %vm171, %v1459
      %1550 = vst.msk [vmem:[%s170 + $0x90] sm:$0xff] %vm171, %v1464
      %1551 = vst.msk [vmem:[%s170 + $0x98] sm:$0xff] %vm171, %v1469
      %1552 = vst.msk [vmem:[%s170 + $0xa0] sm:$0xff] %vm171, %v1474
      %1553 = vst.msk [vmem:[%s170 + $0xa8] sm:$0xff] %vm171, %v1479
      %1554 = vst.msk [vmem:[%s170 + $0xb0] sm:$0xff] %vm171, %v1484
      %1555 = vst.msk [vmem:[%s170 + $0xb8] sm:$0xff] %vm171, %v1489
      %1556 = vst.msk [vmem:[%s170 + $0xc0] sm:$0xff] %vm171, %v1494
      %1557 = vst.msk [vmem:[%s170 + $0xc8] sm:$0xff] %vm171, %v1499
      %1558 = vst.msk [vmem:[%s170 + $0xd0] sm:$0xff] %vm171, %v1504
      %1559 = vst.msk [vmem:[%s170 + $0xd8] sm:$0xff] %vm171, %v1509
      %1560 = vst.msk [vmem:[%s170 + $0xe0] sm:$0xff] %vm171, %v1514
      %1561 = vst.msk [vmem:[%s170 + $0xe8] sm:$0xff] %vm171, %v1519
      %1562 = vst.msk [vmem:[%s170 + $0xf0] sm:$0xff] %vm171, %v1524
      %1563 = vst.msk [vmem:[%s170 + $0xf8] sm:$0xff] %vm171, %v1529
      %p1564 = scmp.lt.s32.totalorder %s14, 1
      %s1565 = scalar_select %p1564, %s14, 1
      %s1566 = smul.addr %s1565, 32
      %s1567 = smul.addr %s1566, 8
      %s1568 = scalar_lea.vmem %s3, %s1567
      // Predicated region
      $region33: #{tpu_custom_call.1} parent=31 // pred_check
        %p1569 = pneg %p100
      $region34: #{tpu_custom_call.1} parent=31 // pred_check_branch
        %1571 = sbr.rel (%p1569) target = $region36
      $region35: #{tpu_custom_call.1} parent=31 // pred_region
        _
      $region36: #{tpu_custom_call.1} parent=31 // pred_fallthru
        _
    $region32: #{tpu_custom_call.1} parent=5 // pred_fallthru
      _
    %p1572 = scmp.le.s32.totalorder 2, %s9
    // Predicated region
    $region37: #{tpu_custom_call.1} parent=5 // pred_check
      %p1573 = pneg %p1572
    $region38: #{tpu_custom_call.1} parent=5 // pred_check_branch
      %1575 = sbr.rel (%p1573) target = $region40
    $region39: #{tpu_custom_call.1} parent=5 // pred_region
      %s1576 = ssub.s32 %s9, 2
      // Predicated region
      $region41: #{tpu_custom_call.1} parent=39 // pred_check
        %p1577 = pneg %p106
      $region42: #{tpu_custom_call.1} parent=39 // pred_check_branch
        %1579 = sbr.rel (%p1577) target = $region44
      $region43: #{tpu_custom_call.1} parent=39 // pred_region
        %p1580 = scmp.lt.s32.totalorder %s15, 1
        %s1581 = scalar_select %p1580, %s15, 1
        %s1582 = smul.addr %s1581, 32
        %s1583 = smul.addr %s1582, 8
        %s1584 = scalar_lea.vmem %s3, %s1583
      $region44: #{tpu_custom_call.1} parent=39 // pred_fallthru
        _
    $region40: #{tpu_custom_call.1} parent=5 // pred_fallthru
      _
  $region6: #{tpu_custom_call.1} parent=0 // loop_footer
    %s13 = sadd.s32 1, %s9
  $region7: #{tpu_custom_call.1} parent=0 // loop_footer_branch
    %8 = sbr.rel target = $region3
  $region8: #{tpu_custom_call.1} parent=0 // loop_exit
    _

</llo_original>
